<compile_context>
chip_gen: v5e
topology: v5e:2x2
jax: 0.10.0
libtpu: 0.0.40
codegen_flags: <defaults>
</compile_context>

<pallas_src>
import functools

import jax
import jax.numpy as jnp
from jax.experimental import pallas as pl
from jax.experimental.pallas import tpu as pltpu


def twist_head_kernel(x_ref, w1_ref, b1_ref, w2_ref, b2_ref,
                      w3_ref, b3_ref, w4_ref, b4_ref, o_ref, acc_ref,
                      *, seq_len, sub):
    s = pl.program_id(1)

    @pl.when(s == 0)
    def _():
        acc_ref[...] = jnp.zeros_like(acc_ref)

    bt, st, d = x_ref.shape
    # Streamed partial sums into a (bt, sub, D) f32 accumulator.  The reshape
    # splits the sublane (sequence) axis at vreg granularity, so the per-step
    # work is plain vreg-aligned VPU adds; the cross-sublane collapse is
    # deferred to the finalize step below.
    acc_ref[...] += jnp.sum(
        x_ref[...].reshape(bt, st // sub, sub, d), axis=1, dtype=jnp.float32)

    @pl.when(s == pl.num_programs(1) - 1)
    def _():
        # Collapse the sub-lane phase once, then the mean.
        mp = jnp.sum(acc_ref[...], axis=1) * (1.0 / seq_len)   # (bt, D) f32

        # bf16 MXU operands (weights already bf16), f32 accumulation.
        h = jnp.dot(mp.astype(jnp.bfloat16), w1_ref[...],
                    preferred_element_type=jnp.float32) + b1_ref[...]
        h = jnp.maximum(h, 0.0)
        h = jnp.dot(h.astype(jnp.bfloat16), w2_ref[...],
                    preferred_element_type=jnp.float32) + b2_ref[...]
        h = jnp.maximum(h, 0.0)
        h = jnp.dot(h.astype(jnp.bfloat16), w3_ref[...],
                    preferred_element_type=jnp.float32) + b3_ref[...]
        h = jnp.maximum(h, 0.0)

        # Final Linear(H, 1): degenerate N=1 MXU shape -> VPU multiply + lane
        # reduction in f32 (w4 passed as a (1, H) row).
        out = jnp.sum(h * w4_ref[...], axis=-1, keepdims=True) + b4_ref[...]
        o_ref[...] = out.astype(o_ref.dtype)                   # (bt, 1)


def _largest_divisor(n, cap, multiple_of=1):
    """Largest divisor of n that is <= cap and a multiple of `multiple_of`;
    falls back to the largest plain divisor <= cap (always >= 1)."""
    cap = max(1, min(n, cap))
    best = None
    for d in range(multiple_of, cap + 1, multiple_of):
        if n % d == 0:
            best = d
    if best is None:
        for d in range(1, cap + 1):
            if n % d == 0:
                best = d
    return best


def _vmem_limit_bytes():
    """Per-generation VMEM budget: ~96 MiB on v5e/v6e (128 MiB physical),
    ~48 MiB on v7x (64 MiB physical).  Conservative fallback if unknown."""
    phys = None
    try:
        info = pltpu.get_tpu_info()
        phys = getattr(info, "vmem_capacity_bytes", None)
    except Exception:
        phys = None
    if phys is not None and phys >= 100 * 1024 * 1024:
        return 96 * 1024 * 1024
    return 48 * 1024 * 1024


def twist_head_forward(last_hidden_state, params, *, b_tile=None, s_tile=None,
                       target_block_bytes=6 << 20):
    """params: dict of (w1,b1,...,w4,b4); weights are (in, out), f32.

    NOTE: the mean divides by the static S; padded sequences are not masked.
    """
    B, S, D = last_hidden_state.shape
    H = params["w1"].shape[1]
    itemsize = jnp.dtype(last_hidden_state.dtype).itemsize
    seq_step = 16 if itemsize == 2 else 8          # bf16 packs 16 sublanes/vreg

    vmem_limit = _vmem_limit_bytes()

    # Rough VMEM accounting: resident weights (count 2x for buffering slack),
    # the f32 accumulator scratch, and 2x the streamed input block.
    weight_bytes = 2 * ((D * H + 2 * H * H) * 2      # bf16 w1..w3
                        + 4 * 8 * H * 4 + 8 * 4)     # padded bias / w4 rows

    # Batch tile: keep it small; guarantee >=2 batch tiles when possible so the
    # "parallel" axis can shard across v7x's 2 TensorCores.
    if b_tile is None:
        if B >= 16 and B % 8 == 0:
            b_tile = _largest_divisor(B, min(64, B // 2), multiple_of=8)
        else:
            b_tile = B
        # D-aware clamp: the minimal (b_tile, 8, D) block, double-buffered,
        # must fit the budget.
        guard = 0
        while (b_tile > 8 and B % 8 == 0
               and 2 * b_tile * 8 * D * itemsize + weight_bytes
                   > int(0.8 * vmem_limit) and guard < 8):
            b_tile = _largest_divisor(B, max(8, b_tile // 2), multiple_of=8)
            guard += 1

    acc_bytes = b_tile * 8 * D * 4

    # Sequence tile: grow toward target_block_bytes (fewer grid steps, longer
    # contiguous DMA runs) while keeping the double-buffered block in budget.
    if s_tile is None:
        budget = int(0.8 * vmem_limit) - weight_bytes - acc_bytes
        per_block = max(8 * b_tile * D * itemsize,
                        min(target_block_bytes, budget // 2))
        s_cap = max(seq_step, per_block // max(1, b_tile * D * itemsize))
        s_tile = _largest_divisor(S, s_cap, multiple_of=seq_step)

    assert B % b_tile == 0 and S % s_tile == 0, (b_tile, s_tile, B, S)
    sub = 8 if s_tile % 8 == 0 else 1

    grid = (B // b_tile, S // s_tile)

    # Weight operands in bf16 (native MXU input); biases and the VPU-path
    # final-layer row stay f32.
    w1 = params["w1"].astype(jnp.bfloat16)
    w2 = params["w2"].astype(jnp.bfloat16)
    w3 = params["w3"].astype(jnp.bfloat16)
    w4_row = params["w4"].reshape(1, H).astype(jnp.float32)
    b1, b2, b3 = params["b1"], params["b2"], params["b3"]
    b4 = params["b4"].reshape(1, 1)

    def resident(shape):
        # Same block every grid step -> stays in VMEM, DMA'd once.
        return pl.BlockSpec(shape, lambda b, s: (0,) * len(shape))

    in_specs = [
        pl.BlockSpec((b_tile, s_tile, D), lambda b, s: (b, s, 0)),  # streamed
        resident((D, H)), resident((1, H)),
        resident((H, H)), resident((1, H)),
        resident((H, H)), resident((1, H)),
        resident((1, H)), resident((1, 1)),
    ]
    out_spec = pl.BlockSpec((b_tile, 1), lambda b, s: (b, 0))

    flops = B * S * D + 2 * B * (D * H + 2 * H * H + H)
    bytes_accessed = (last_hidden_state.size * itemsize
                      + (D * H + 2 * H * H) * 2          # bf16 weights
                      + (3 * H + H + 1) * 4              # biases + w4 row
                      + B * 4)                           # output
    cost = pl.CostEstimate(flops=flops, transcendentals=0,
                           bytes_accessed=bytes_accessed)

    kernel = functools.partial(twist_head_kernel, seq_len=S, sub=sub)
    return pl.pallas_call(
        kernel,
        out_shape=jax.ShapeDtypeStruct((B, 1), jnp.float32),
        grid_spec=pltpu.PrefetchScalarGridSpec(
            num_scalar_prefetch=0,
            grid=grid,
            in_specs=in_specs,
            out_specs=out_spec,
            scratch_shapes=[pltpu.VMEM((b_tile, sub, D), jnp.float32)],
        ),
        compiler_params=pltpu.CompilerParams(
            dimension_semantics=("parallel", "arbitrary"),
            vmem_limit_bytes=vmem_limit,
        ),
        cost_estimate=cost,
    )(last_hidden_state, w1, b1, w2, b2, w3, b3, w4_row, b4)


def init_params(key, input_dim, h):
    """Deterministic init, PyTorch nn.Linear-style; returned as (in, out)."""
    ks = jax.random.split(key, 8)

    def linear(kw, kb, fan_in, fan_out):
        bound = 1.0 / jnp.sqrt(fan_in)
        w = jax.random.uniform(kw, (fan_out, fan_in), jnp.float32, -bound, bound)
        b = jax.random.uniform(kb, (fan_out,), jnp.float32, -bound, bound)
        return w.T, b.reshape(1, fan_out)   # (in, out), (1, out)

    w1, b1 = linear(ks[0], ks[1], input_dim, h)
    w2, b2 = linear(ks[2], ks[3], h, h)
    w3, b3 = linear(ks[4], ks[5], h, h)
    w4, b4 = linear(ks[6], ks[7], h, 1)
    return dict(w1=w1, b1=b1, w2=w2, b2=b2, w3=w3, b3=b3, w4=w4, b4=b4)


def reference_forward(last_hidden_state, p):
    """Module semantics (mean -> 4-layer ReLU MLP), mirroring the kernel's
    bf16 MXU-operand / f32-accumulation precision for a tight comparison."""
    mp = jnp.mean(last_hidden_state.astype(jnp.float32), axis=1)

    def dense_bf16(h, w, b):
        return jnp.dot(h.astype(jnp.bfloat16), w.astype(jnp.bfloat16),
                       preferred_element_type=jnp.float32) + b

    h1 = jnp.maximum(dense_bf16(mp, p["w1"], p["b1"]), 0.0)
    h2 = jnp.maximum(dense_bf16(h1, p["w2"], p["b2"]), 0.0)
    h3 = jnp.maximum(dense_bf16(h2, p["w3"], p["b3"]), 0.0)
    return h3 @ p["w4"] + p["b4"]           # final layer f32, like the kernel


if __name__ == "__main__":
    # Small shapes consistent with the module: (B, S, D) hidden states.
    B, S, D, H = 16, 64, 256, 128

    key = jax.random.PRNGKey(0)
    k_x, k_p = jax.random.split(key)
    last_hidden_state = jax.random.normal(k_x, (B, S, D), jnp.float32)
    params = init_params(k_p, input_dim=D, h=H)
    ref = reference_forward(last_hidden_state, params)

    # 1) Auto-tiled path (large s_tile, small b_tile, VMEM-budgeted).
    out_auto = twist_head_forward(last_hidden_state, params)
    out_auto = jax.block_until_ready(out_auto)
    assert out_auto.shape == (B, 1)
    assert jnp.allclose(out_auto, ref, atol=5e-3, rtol=5e-3), (
        float(jnp.max(jnp.abs(out_auto - ref))))

    # 2) Explicit small tiles so the multi-step streamed reduction
    #    (grid = (2, 4)) and the parallel batch axis are exercised.
    out_tiled = twist_head_forward(last_hidden_state, params,
                                   b_tile=8, s_tile=16)
    out_tiled = jax.block_until_ready(out_tiled)
    assert out_tiled.shape == (B, 1)
    assert jnp.allclose(out_tiled, ref, atol=5e-3, rtol=5e-3), (
        float(jnp.max(jnp.abs(out_tiled - ref))))

    print("KERNEL_OK")
</pallas_src>

<mosaic_0001>
module attributes {stable_mosaic.version = 11 : i64} {
  func.func @twist_head_kernel(%arg0: i32, %arg1: i32, %arg2: memref<8x64x256xf32, #tpu.memory_space<vmem>>, %arg3: memref<256x128xbf16, #tpu.memory_space<vmem>>, %arg4: memref<1x128xf32, #tpu.memory_space<vmem>>, %arg5: memref<128x128xbf16, #tpu.memory_space<vmem>>, %arg6: memref<1x128xf32, #tpu.memory_space<vmem>>, %arg7: memref<128x128xbf16, #tpu.memory_space<vmem>>, %arg8: memref<1x128xf32, #tpu.memory_space<vmem>>, %arg9: memref<1x128xf32, #tpu.memory_space<vmem>>, %arg10: memref<1x1xf32, #tpu.memory_space<vmem>>, %arg11: memref<8x1xf32, #tpu.memory_space<vmem>>, %arg12: memref<8x8x256xf32, #tpu.memory_space<vmem>>) attributes {dimension_semantics = [#tpu.dimension_semantics<parallel>, #tpu.dimension_semantics<arbitrary>], iteration_bounds = array<i64: 2, 1>, scalar_prefetch = 0 : i64, scratch_operands = 1 : i64, tpu.core_type = #tpu.core_type<tc>, window_params = [{transform_indices = @transform_0, window_bounds = array<i64: 8, 64, 256>}, {pipeline_mode = #tpu.pipeline_mode<synchronous>, transform_indices = @transform_1, window_bounds = array<i64: 256, 128>}, {pipeline_mode = #tpu.pipeline_mode<synchronous>, transform_indices = @transform_2, window_bounds = array<i64: 1, 128>}, {pipeline_mode = #tpu.pipeline_mode<synchronous>, transform_indices = @transform_3, window_bounds = array<i64: 128, 128>}, {pipeline_mode = #tpu.pipeline_mode<synchronous>, transform_indices = @transform_4, window_bounds = array<i64: 1, 128>}, {pipeline_mode = #tpu.pipeline_mode<synchronous>, transform_indices = @transform_5, window_bounds = array<i64: 128, 128>}, {pipeline_mode = #tpu.pipeline_mode<synchronous>, transform_indices = @transform_6, window_bounds = array<i64: 1, 128>}, {pipeline_mode = #tpu.pipeline_mode<synchronous>, transform_indices = @transform_7, window_bounds = array<i64: 1, 128>}, {pipeline_mode = #tpu.pipeline_mode<synchronous>, transform_indices = @transform_8, window_bounds = array<i64: 1, 1>}, {transform_indices = @transform_9, window_bounds = array<i64: 8, 1>}]} {
    %c0_i32 = arith.constant 0 : i32
    %0 = arith.cmpi eq, %arg1, %c0_i32 : i32
    %1 = arith.extui %0 : i1 to i32
    %c0_i32_0 = arith.constant 0 : i32
    %2 = arith.cmpi ne, %1, %c0_i32_0 : i32
    scf.if %2 {
      %cst_11 = arith.constant 0.000000e+00 : f32
      %12 = vector.broadcast %cst_11 : f32 to vector<8x8x256xf32>
      %c0_12 = arith.constant 0 : index
      %c0_13 = arith.constant 0 : index
      %c0_14 = arith.constant 0 : index
      %13 = vector.load %arg12[%c0_12, %c0_13, %c0_14] : memref<8x8x256xf32, #tpu.memory_space<vmem>>, vector<8x8x256xf32>
      tpu.vector_store %arg12[%c0_12, %c0_13, %c0_14], %12 {strides = array<i32>} : memref<8x8x256xf32, #tpu.memory_space<vmem>>, vector<8x8x256xf32>,
    } else {
    }
    %c0 = arith.constant 0 : index
    %c0_1 = arith.constant 0 : index
    %c0_2 = arith.constant 0 : index
    %3 = vector.load %arg12[%c0, %c0_1, %c0_2] : memref<8x8x256xf32, #tpu.memory_space<vmem>>, vector<8x8x256xf32>
    %c0_3 = arith.constant 0 : index
    %c0_4 = arith.constant 0 : index
    %c0_5 = arith.constant 0 : index
    %4 = vector.load %arg2[%c0_3, %c0_4, %c0_5] : memref<8x64x256xf32, #tpu.memory_space<vmem>>, vector<8x64x256xf32>
    %5 = vector.shape_cast %4 : vector<8x64x256xf32> to vector<8x8x8x256xf32>
    %cst = arith.constant dense<0.000000e+00> : vector<8x8x256xf32>
    %6 = vector.multi_reduction <add>, %5, %cst [1] : vector<8x8x8x256xf32> to vector<8x8x256xf32>
    %7 = arith.addf %3, %6 : vector<8x8x256xf32>
    %c0_6 = arith.constant 0 : index
    %c0_7 = arith.constant 0 : index
    %c0_8 = arith.constant 0 : index
    %8 = vector.load %arg12[%c0_6, %c0_7, %c0_8] : memref<8x8x256xf32, #tpu.memory_space<vmem>>, vector<8x8x256xf32>
    tpu.vector_store %arg12[%c0_6, %c0_7, %c0_8], %7 {strides = array<i32>} : memref<8x8x256xf32, #tpu.memory_space<vmem>>, vector<8x8x256xf32>,
    %c0_i32_9 = arith.constant 0 : i32
    %9 = arith.cmpi eq, %arg1, %c0_i32_9 : i32
    %10 = arith.extui %9 : i1 to i32
    %c0_i32_10 = arith.constant 0 : i32
    %11 = arith.cmpi ne, %10, %c0_i32_10 : i32
    scf.if %11 {
      %c0_11 = arith.constant 0 : index
      %c0_12 = arith.constant 0 : index
      %c0_13 = arith.constant 0 : index
      %12 = vector.load %arg12[%c0_11, %c0_12, %c0_13] : memref<8x8x256xf32, #tpu.memory_space<vmem>>, vector<8x8x256xf32>
      %cst_14 = arith.constant dense<0.000000e+00> : vector<8x256xf32>
      %13 = vector.multi_reduction <add>, %12, %cst_14 [1] : vector<8x8x256xf32> to vector<8x256xf32>
      %cst_15 = arith.constant 1.562500e-02 : f32
      %14 = vector.broadcast %cst_15 : f32 to vector<8x256xf32>
      %15 = arith.mulf %13, %14 : vector<8x256xf32>
      %16 = arith.truncf %15 : vector<8x256xf32> to vector<8x256xbf16>
      %c0_16 = arith.constant 0 : index
      %c0_17 = arith.constant 0 : index
      %17 = vector.load %arg3[%c0_16, %c0_17] : memref<256x128xbf16, #tpu.memory_space<vmem>>, vector<256x128xbf16>
      %cst_18 = arith.constant dense<0.000000e+00> : vector<8x128xf32>
      %18 = tpu.matmul %16, %17, %cst_18 {dimension_numbers = #tpu.dot_dimension_numbers<[1], [0], [0], [1], [0, 0, 1, 1], [], []>} : vector<8x256xbf16>, vector<256x128xbf16>, vector<8x128xf32> -> vector<8x128xf32>
      %c0_19 = arith.constant 0 : index
      %c0_20 = arith.constant 0 : index
      %19 = vector.load %arg4[%c0_19, %c0_20] : memref<1x128xf32, #tpu.memory_space<vmem>>, vector<1x128xf32>
      %20 = vector.broadcast %19 : vector<1x128xf32> to vector<8x128xf32>
      %21 = arith.addf %18, %20 : vector<8x128xf32>
      %cst_21 = arith.constant 0.000000e+00 : f32
      %22 = vector.broadcast %cst_21 : f32 to vector<8x128xf32>
      %23 = arith.maximumf %21, %22 : vector<8x128xf32>
      %24 = arith.truncf %23 : vector<8x128xf32> to vector<8x128xbf16>
      %c0_22 = arith.constant 0 : index
      %c0_23 = arith.constant 0 : index
      %25 = vector.load %arg5[%c0_22, %c0_23] : memref<128x128xbf16, #tpu.memory_space<vmem>>, vector<128x128xbf16>
      %cst_24 = arith.constant dense<0.000000e+00> : vector<8x128xf32>
      %26 = tpu.matmul %24, %25, %cst_24 {dimension_numbers = #tpu.dot_dimension_numbers<[1], [0], [0], [1], [0, 0, 1, 1], [], []>} : vector<8x128xbf16>, vector<128x128xbf16>, vector<8x128xf32> -> vector<8x128xf32>
      %c0_25 = arith.constant 0 : index
      %c0_26 = arith.constant 0 : index
      %27 = vector.load %arg6[%c0_25, %c0_26] : memref<1x128xf32, #tpu.memory_space<vmem>>, vector<1x128xf32>
      %28 = vector.broadcast %27 : vector<1x128xf32> to vector<8x128xf32>
      %29 = arith.addf %26, %28 : vector<8x128xf32>
      %cst_27 = arith.constant 0.000000e+00 : f32
      %30 = vector.broadcast %cst_27 : f32 to vector<8x128xf32>
      %31 = arith.maximumf %29, %30 : vector<8x128xf32>
      %32 = arith.truncf %31 : vector<8x128xf32> to vector<8x128xbf16>
      %c0_28 = arith.constant 0 : index
      %c0_29 = arith.constant 0 : index
      %33 = vector.load %arg7[%c0_28, %c0_29] : memref<128x128xbf16, #tpu.memory_space<vmem>>, vector<128x128xbf16>
      %cst_30 = arith.constant dense<0.000000e+00> : vector<8x128xf32>
      %34 = tpu.matmul %32, %33, %cst_30 {dimension_numbers = #tpu.dot_dimension_numbers<[1], [0], [0], [1], [0, 0, 1, 1], [], []>} : vector<8x128xbf16>, vector<128x128xbf16>, vector<8x128xf32> -> vector<8x128xf32>
      %c0_31 = arith.constant 0 : index
      %c0_32 = arith.constant 0 : index
      %35 = vector.load %arg8[%c0_31, %c0_32] : memref<1x128xf32, #tpu.memory_space<vmem>>, vector<1x128xf32>
      %36 = vector.broadcast %35 : vector<1x128xf32> to vector<8x128xf32>
      %37 = arith.addf %34, %36 : vector<8x128xf32>
      %cst_33 = arith.constant 0.000000e+00 : f32
      %38 = vector.broadcast %cst_33 : f32 to vector<8x128xf32>
      %39 = arith.maximumf %37, %38 : vector<8x128xf32>
      %c0_34 = arith.constant 0 : index
      %c0_35 = arith.constant 0 : index
      %40 = vector.load %arg9[%c0_34, %c0_35] : memref<1x128xf32, #tpu.memory_space<vmem>>, vector<1x128xf32>
      %41 = vector.broadcast %40 : vector<1x128xf32> to vector<8x128xf32>
      %42 = arith.mulf %39, %41 : vector<8x128xf32>
      %cst_36 = arith.constant dense<0.000000e+00> : vector<8xf32>
      %43 = vector.multi_reduction <add>, %42, %cst_36 [1] : vector<8x128xf32> to vector<8xf32>
      %44 = vector.shape_cast %43 : vector<8xf32> to vector<8x1xf32>
      %c0_37 = arith.constant 0 : index
      %c0_38 = arith.constant 0 : index
      %45 = vector.load %arg10[%c0_37, %c0_38] : memref<1x1xf32, #tpu.memory_space<vmem>>, vector<1x1xf32>
      %46 = vector.broadcast %45 : vector<1x1xf32> to vector<8x1xf32>
      %47 = arith.addf %44, %46 : vector<8x1xf32>
      %c0_39 = arith.constant 0 : index
      %c0_40 = arith.constant 0 : index
      %48 = vector.load %arg11[%c0_39, %c0_40] : memref<8x1xf32, #tpu.memory_space<vmem>>, vector<8x1xf32>
      tpu.vector_store %arg11[%c0_39, %c0_40], %47 {strides = array<i32>} : memref<8x1xf32, #tpu.memory_space<vmem>>, vector<8x1xf32>,
    } else {
    }
    return
  }
  func.func @transform_0(%arg0: i32, %arg1: i32) -> (i32, i32, i32) {
    %c0_i32 = arith.constant 0 : i32
    %c0_i32_0 = arith.constant 0 : i32
    return %arg0, %arg1, %c0_i32 : i32, i32, i32
  }
  func.func @transform_1(%arg0: i32, %arg1: i32) -> (i32, i32) {
    %c0_i32 = arith.constant 0 : i32
    %c0_i32_0 = arith.constant 0 : i32
    %c0_i32_1 = arith.constant 0 : i32
    return %c0_i32, %c0_i32_0 : i32, i32
  }
  func.func @transform_2(%arg0: i32, %arg1: i32) -> (i32, i32) {
    %c0_i32 = arith.constant 0 : i32
    %c0_i32_0 = arith.constant 0 : i32
    %c0_i32_1 = arith.constant 0 : i32
    return %c0_i32, %c0_i32_0 : i32, i32
  }
  func.func @transform_3(%arg0: i32, %arg1: i32) -> (i32, i32) {
    %c0_i32 = arith.constant 0 : i32
    %c0_i32_0 = arith.constant 0 : i32
    %c0_i32_1 = arith.constant 0 : i32
    return %c0_i32, %c0_i32_0 : i32, i32
  }
  func.func @transform_4(%arg0: i32, %arg1: i32) -> (i32, i32) {
    %c0_i32 = arith.constant 0 : i32
    %c0_i32_0 = arith.constant 0 : i32
    %c0_i32_1 = arith.constant 0 : i32
    return %c0_i32, %c0_i32_0 : i32, i32
  }
  func.func @transform_5(%arg0: i32, %arg1: i32) -> (i32, i32) {
    %c0_i32 = arith.constant 0 : i32
    %c0_i32_0 = arith.constant 0 : i32
    %c0_i32_1 = arith.constant 0 : i32
    return %c0_i32, %c0_i32_0 : i32, i32
  }
  func.func @transform_6(%arg0: i32, %arg1: i32) -> (i32, i32) {
    %c0_i32 = arith.constant 0 : i32
    %c0_i32_0 = arith.constant 0 : i32
    %c0_i32_1 = arith.constant 0 : i32
    return %c0_i32, %c0_i32_0 : i32, i32
  }
  func.func @transform_7(%arg0: i32, %arg1: i32) -> (i32, i32) {
    %c0_i32 = arith.constant 0 : i32
    %c0_i32_0 = arith.constant 0 : i32
    %c0_i32_1 = arith.constant 0 : i32
    return %c0_i32, %c0_i32_0 : i32, i32
  }
  func.func @transform_8(%arg0: i32, %arg1: i32) -> (i32, i32) {
    %c0_i32 = arith.constant 0 : i32
    %c0_i32_0 = arith.constant 0 : i32
    %c0_i32_1 = arith.constant 0 : i32
    return %c0_i32, %c0_i32_0 : i32, i32
  }
  func.func @transform_9(%arg0: i32, %arg1: i32) -> (i32, i32) {
    %c0_i32 = arith.constant 0 : i32
    %c0_i32_0 = arith.constant 0 : i32
    return %arg0, %c0_i32 : i32, i32
  }
}

</mosaic_0001>

<llo_original>
// kernel: tpu_custom_call.1
$region0: #{tpu_custom_call.1}
  #allocation0 [shape = 'u32[]', space=smem, size = 0x4, offset = 0x4, fixed_abs, tag = 'smem constant byte address 0x4 - core index']
  #allocation1 [shape = 'u32[72,128]{1,0:T(1,128)}', space=vmem, size = 0x9000, scoped, tag = 'internal scratch']
  #allocation2 [shape = 'f32[8,8,256]{2,1,0:T(8,128)}', space=vmem, size = 0x10000, scoped, tag = 'scratch operand']
  #allocation3 [shape = 'f32[1,1]{1,0:T(1,128)S(1)}', space=vmem, size = 0x200, scoped, tag = 'scoped memory for tpu_custom_call.1']
  %s0 = inlined_call_operand.hbm [shape: f32[16,64,256], index: 0, kind: input, shape index: {}]
  %s1 = inlined_call_operand.hbm [shape: bf16[256,128], index: 1, kind: input, shape index: {}]
  %s2 = inlined_call_operand.vmem [shape: f32[1,128], index: 2, kind: input, shape index: {}]
  %s3 = inlined_call_operand.hbm [shape: bf16[128,128], index: 3, kind: input, shape index: {}]
  %s4 = inlined_call_operand.vmem [shape: f32[1,128], index: 4, kind: input, shape index: {}]
  %s5 = inlined_call_operand.hbm [shape: bf16[128,128], index: 5, kind: input, shape index: {}]
  %s6 = inlined_call_operand.vmem [shape: f32[1,128], index: 6, kind: input, shape index: {}]
  %s7 = inlined_call_operand.vmem [shape: f32[1,128], index: 7, kind: input, shape index: {}]
  %s8 = inlined_call_operand.<no memory space> [shape: f32[1,1], index: 8, kind: input, shape index: {}]
  %s9 = inlined_call_operand.vmem [shape: f32[16,1], index: 9, kind: output, shape index: {}]
  %s10 = sld [smem:[#allocation0]]
  $region93: #{tpu_custom_call.1} parent=0
    _
  %s12 = ssub.s32 1, %s10
  %s13 = scalar_select 0, %s12, %s10
  %v14 = vstv %s8
  %15 = vst [vmem:[#allocation3] sm:$0x1] %v14
  $region1: #{tpu_custom_call.1} parent=0
    #allocation4 [shape = 'u8[1048576]{0}', space=vmem, size = 0x100000, scoped, tag = 'input window, operand 0']
    #allocation5 [shape = 's32[2]{0}', space=sflag, size = 0x8, scoped, tag = 'scoped memory for tpu_custom_call.1']
    #allocation6 [shape = 'u8[65536]{0}', space=vmem, size = 0x10000, scoped, tag = 'input window, operand 1, single buffered']
    #allocation7 [shape = 's32[1]{0}', space=sflag, size = 0x4, scoped, tag = 'scoped memory for tpu_custom_call.1']
    #allocation8 [shape = 'u8[32768]{0}', space=vmem, size = 0x8000, scoped, tag = 'input window, operand 3, single buffered']
    #allocation9 [shape = 'u8[32768]{0}', space=vmem, size = 0x8000, scoped, tag = 'input window, operand 5, single buffered']
    #allocation10 [shape = 's32[1]{0}', space=sflag, size = 0x4, scoped, tag = 'scoped memory for tpu_custom_call.1']
    %16 = vsyncpa [#allocation5], 0
    %s17 = scalar_lea.sflag [#allocation5], 1
    %18 = vsyncpa %s17, 0
    %19 = vsyncpa [#allocation7], 0
    %20 = vsyncpa [#allocation10], 0
    loop: start=0, step=1, limit=4
    $region2: #{tpu_custom_call.1} parent=1 // loop_pre_header
      _
    $region3: #{tpu_custom_call.1} parent=1 // loop_header
      %s22 = sphi 0, %s26
      %p23 = scmp.ge.s32.totalorder %s22, 4
      %s29 = sphi 0, %s41
      %s30 = sphi 0, %s37
      %s31 = sphi 0, %s29
      %s32 = sphi 0, %s30
      %s33 = sphi 0, %s31
      %s34 = sphi 0, %s32
      %s46 = sphi 0, %s48
      %s49 = sphi 0, %s46
      %s50 = sphi 0, %s49
      %s66 = sphi 0, %s50
      %s70 = sphi 0, %s70
      %s72 = sphi 0, %s70
      %s73 = sphi 0, %s72
      %s87 = sphi 0, %s73
      %s91 = sphi 0, %s91
      %s93 = sphi 0, %s91
      %s94 = sphi 0, %s93
      %s108 = sphi 0, %s94
      %s112 = sphi 0, %s112
      %s114 = sphi 0, %s112
      %s115 = sphi 0, %s114
      %s129 = sphi 0, %s115
      %s133 = sphi 0, %s133
      %s135 = sphi 0, %s133
      %s136 = sphi 0, %s135
      %s150 = sphi 0, %s136
      %s154 = sphi 0, %s154
      %s156 = sphi 0, %s154
      %s157 = sphi 0, %s156
      %s171 = sphi 0, %s157
      %s175 = sphi 0, %s175
      %s177 = sphi 0, %s175
      %s178 = sphi 0, %s177
      %s192 = sphi 0, %s178
      %s196 = sphi 0, %s196
      %s198 = sphi 0, %s196
      %s199 = sphi 0, %s198
      %s213 = sphi 0, %s199
      %s217 = sphi 0, %s217
      %s219 = sphi 0, %s217
      %s220 = sphi 0, %s219
      %s234 = sphi 0, %s220
      %s240 = sphi 0, %s242
      %s243 = sphi 0, %s240
      %s244 = sphi 0, %s243
      %s260 = sphi 0, %s244
    $region4: #{tpu_custom_call.1} parent=1 // loop_header_branch
      %25 = sbr.rel (%p23) target = $region8
    $region5: #{tpu_custom_call.1} parent=1 // loop_body
      %s27 = ssub.s32 %s22, 1
      %s28 = ssub.s32 %s22, 2
      %s35 = sadd.s32 1, %s30
      %p36 = scmp.ge.s32.totalorder %s35, 1
      %s37 = scalar_select %p36, 0, %s35
      %s38 = sadd.s32 1, %s29
      %s39 = scalar_select %p36, %s38, %s29
      %p40 = scmp.ge.s32.totalorder %s39, 2
      %s41 = scalar_select %p40, 0, %s39
      %s42 = ssub.s32 %s29, %s41
      %s43 = ssub.s32 %s30, %s37
      %s44 = sor.u32 %s42, %s43
      %p45 = scmp.eq.s32.totalorder %s44, 0
      %s47 = sadd.s32 %s46, 1
      %s48 = scalar_select %p45, %s46, %s47
      %p51 = pneg %p45
      %p52 = scmp.eq.s32.totalorder %s22, 1
      %p53 = por %p51, %p52
      %p54 = scmp.ne.s32.totalorder %s46, %s49
      %p55 = scmp.eq.s32.totalorder %s22, 0
      %p56 = por %p54, %p55
      %p57 = scmp.ne.s32.totalorder %s46, %s49
      %p58 = scmp.eq.s32.totalorder %s27, 1
      %p59 = por %p57, %p58
      %p60 = scmp.ne.s32.totalorder %s49, %s50
      %p61 = scmp.eq.s32.totalorder %s27, 0
      %p62 = por %p60, %p61
      %p63 = scmp.ne.s32.totalorder %s49, %s50
      %p64 = scmp.eq.s32.totalorder %s28, 1
      %p65 = por %p63, %p64
      %p67 = scmp.ne.s32.totalorder %s50, %s66
      %p68 = scmp.eq.s32.totalorder %s28, 0
      %p69 = por %p67, %p68
      %s71 = sadd.s32 %s70, 1
      %p74 = scmp.eq.s32.totalorder %s22, 1
      %p75 = scmp.ne.s32.totalorder %s70, %s72
      %p76 = scmp.eq.s32.totalorder %s22, 0
      %p77 = por %p75, %p76
      %p78 = scmp.ne.s32.totalorder %s70, %s72
      %p79 = scmp.eq.s32.totalorder %s27, 1
      %p80 = por %p78, %p79
      %p81 = scmp.ne.s32.totalorder %s72, %s73
      %p82 = scmp.eq.s32.totalorder %s27, 0
      %p83 = por %p81, %p82
      %p84 = scmp.ne.s32.totalorder %s72, %s73
      %p85 = scmp.eq.s32.totalorder %s28, 1
      %p86 = por %p84, %p85
      %p88 = scmp.ne.s32.totalorder %s73, %s87
      %p89 = scmp.eq.s32.totalorder %s28, 0
      %p90 = por %p88, %p89
      %s92 = sadd.s32 %s91, 1
      %p95 = scmp.eq.s32.totalorder %s22, 1
      %p96 = scmp.ne.s32.totalorder %s91, %s93
      %p97 = scmp.eq.s32.totalorder %s22, 0
      %p98 = por %p96, %p97
      %p99 = scmp.ne.s32.totalorder %s91, %s93
      %p100 = scmp.eq.s32.totalorder %s27, 1
      %p101 = por %p99, %p100
      %p102 = scmp.ne.s32.totalorder %s93, %s94
      %p103 = scmp.eq.s32.totalorder %s27, 0
      %p104 = por %p102, %p103
      %p105 = scmp.ne.s32.totalorder %s93, %s94
      %p106 = scmp.eq.s32.totalorder %s28, 1
      %p107 = por %p105, %p106
      %p109 = scmp.ne.s32.totalorder %s94, %s108
      %p110 = scmp.eq.s32.totalorder %s28, 0
      %p111 = por %p109, %p110
      %s113 = sadd.s32 %s112, 1
      %p116 = scmp.eq.s32.totalorder %s22, 1
      %p117 = scmp.ne.s32.totalorder %s112, %s114
      %p118 = scmp.eq.s32.totalorder %s22, 0
      %p119 = por %p117, %p118
      %p120 = scmp.ne.s32.totalorder %s112, %s114
      %p121 = scmp.eq.s32.totalorder %s27, 1
      %p122 = por %p120, %p121
      %p123 = scmp.ne.s32.totalorder %s114, %s115
      %p124 = scmp.eq.s32.totalorder %s27, 0
      %p125 = por %p123, %p124
      %p126 = scmp.ne.s32.totalorder %s114, %s115
      %p127 = scmp.eq.s32.totalorder %s28, 1
      %p128 = por %p126, %p127
      %p130 = scmp.ne.s32.totalorder %s115, %s129
      %p131 = scmp.eq.s32.totalorder %s28, 0
      %p132 = por %p130, %p131
      %s134 = sadd.s32 %s133, 1
      %p137 = scmp.eq.s32.totalorder %s22, 1
      %p138 = scmp.ne.s32.totalorder %s133, %s135
      %p139 = scmp.eq.s32.totalorder %s22, 0
      %p140 = por %p138, %p139
      %p141 = scmp.ne.s32.totalorder %s133, %s135
      %p142 = scmp.eq.s32.totalorder %s27, 1
      %p143 = por %p141, %p142
      %p144 = scmp.ne.s32.totalorder %s135, %s136
      %p145 = scmp.eq.s32.totalorder %s27, 0
      %p146 = por %p144, %p145
      %p147 = scmp.ne.s32.totalorder %s135, %s136
      %p148 = scmp.eq.s32.totalorder %s28, 1
      %p149 = por %p147, %p148
      %p151 = scmp.ne.s32.totalorder %s136, %s150
      %p152 = scmp.eq.s32.totalorder %s28, 0
      %p153 = por %p151, %p152
      %s155 = sadd.s32 %s154, 1
      %p158 = scmp.eq.s32.totalorder %s22, 1
      %p159 = scmp.ne.s32.totalorder %s154, %s156
      %p160 = scmp.eq.s32.totalorder %s22, 0
      %p161 = por %p159, %p160
      %p162 = scmp.ne.s32.totalorder %s154, %s156
      %p163 = scmp.eq.s32.totalorder %s27, 1
      %p164 = por %p162, %p163
      %p165 = scmp.ne.s32.totalorder %s156, %s157
      %p166 = scmp.eq.s32.totalorder %s27, 0
      %p167 = por %p165, %p166
      %p168 = scmp.ne.s32.totalorder %s156, %s157
      %p169 = scmp.eq.s32.totalorder %s28, 1
      %p170 = por %p168, %p169
      %p172 = scmp.ne.s32.totalorder %s157, %s171
      %p173 = scmp.eq.s32.totalorder %s28, 0
      %p174 = por %p172, %p173
      %s176 = sadd.s32 %s175, 1
      %p179 = scmp.eq.s32.totalorder %s22, 1
      %p180 = scmp.ne.s32.totalorder %s175, %s177
      %p181 = scmp.eq.s32.totalorder %s22, 0
      %p182 = por %p180, %p181
      %p183 = scmp.ne.s32.totalorder %s175, %s177
      %p184 = scmp.eq.s32.totalorder %s27, 1
      %p185 = por %p183, %p184
      %p186 = scmp.ne.s32.totalorder %s177, %s178
      %p187 = scmp.eq.s32.totalorder %s27, 0
      %p188 = por %p186, %p187
      %p189 = scmp.ne.s32.totalorder %s177, %s178
      %p190 = scmp.eq.s32.totalorder %s28, 1
      %p191 = por %p189, %p190
      %p193 = scmp.ne.s32.totalorder %s178, %s192
      %p194 = scmp.eq.s32.totalorder %s28, 0
      %p195 = por %p193, %p194
      %s197 = sadd.s32 %s196, 1
      %p200 = scmp.eq.s32.totalorder %s22, 1
      %p201 = scmp.ne.s32.totalorder %s196, %s198
      %p202 = scmp.eq.s32.totalorder %s22, 0
      %p203 = por %p201, %p202
      %p204 = scmp.ne.s32.totalorder %s196, %s198
      %p205 = scmp.eq.s32.totalorder %s27, 1
      %p206 = por %p204, %p205
      %p207 = scmp.ne.s32.totalorder %s198, %s199
      %p208 = scmp.eq.s32.totalorder %s27, 0
      %p209 = por %p207, %p208
      %p210 = scmp.ne.s32.totalorder %s198, %s199
      %p211 = scmp.eq.s32.totalorder %s28, 1
      %p212 = por %p210, %p211
      %p214 = scmp.ne.s32.totalorder %s199, %s213
      %p215 = scmp.eq.s32.totalorder %s28, 0
      %p216 = por %p214, %p215
      %s218 = sadd.s32 %s217, 1
      %p221 = scmp.eq.s32.totalorder %s22, 1
      %p222 = scmp.ne.s32.totalorder %s217, %s219
      %p223 = scmp.eq.s32.totalorder %s22, 0
      %p224 = por %p222, %p223
      %p225 = scmp.ne.s32.totalorder %s217, %s219
      %p226 = scmp.eq.s32.totalorder %s27, 1
      %p227 = por %p225, %p226
      %p228 = scmp.ne.s32.totalorder %s219, %s220
      %p229 = scmp.eq.s32.totalorder %s27, 0
      %p230 = por %p228, %p229
      %p231 = scmp.ne.s32.totalorder %s219, %s220
      %p232 = scmp.eq.s32.totalorder %s28, 1
      %p233 = por %p231, %p232
      %p235 = scmp.ne.s32.totalorder %s220, %s234
      %p236 = scmp.eq.s32.totalorder %s28, 0
      %p237 = por %p235, %p236
      %s238 = ssub.s32 %s29, %s41
      %p239 = scmp.eq.s32.totalorder %s238, 0
      %s241 = sadd.s32 %s240, 1
      %s242 = scalar_select %p239, %s240, %s241
      %p245 = pneg %p239
      %p246 = scmp.eq.s32.totalorder %s22, 1
      %p247 = por %p245, %p246
      %p248 = scmp.ne.s32.totalorder %s240, %s243
      %p249 = scmp.eq.s32.totalorder %s22, 0
      %p250 = por %p248, %p249
      %p251 = scmp.ne.s32.totalorder %s240, %s243
      %p252 = scmp.eq.s32.totalorder %s27, 1
      %p253 = por %p251, %p252
      %p254 = scmp.ne.s32.totalorder %s243, %s244
      %p255 = scmp.eq.s32.totalorder %s27, 0
      %p256 = por %p254, %p255
      %p257 = scmp.ne.s32.totalorder %s243, %s244
      %p258 = scmp.eq.s32.totalorder %s28, 1
      %p259 = por %p257, %p258
      %p261 = scmp.ne.s32.totalorder %s244, %s260
      %p262 = scmp.eq.s32.totalorder %s28, 0
      %p263 = por %p261, %p262
      %p264 = scmp.le.s32.totalorder 1, %s22
      %p265 = scmp.lt.s32.totalorder %s22, 3
      %p266 = pnand %p264, %p265
      %p267 = pneg %p266
      // Predicated region
      $region9: #{tpu_custom_call.1} parent=5 // pred_check
        _
      $region10: #{tpu_custom_call.1} parent=5 // pred_check_branch
        %269 = sbr.rel (%p266) target = $region12
      $region11: #{tpu_custom_call.1} parent=5 // pred_region
        %s270 = ssub.s32 %s22, 1
        // Predicated region
        $region13: #{tpu_custom_call.1} parent=11 // pred_check
          %p271 = pneg %p83
        $region14: #{tpu_custom_call.1} parent=11 // pred_check_branch
          %273 = sbr.rel (%p271) target = $region16
        $region15: #{tpu_custom_call.1} parent=11 // pred_region
          %275 = vsyncadd [#allocation7], 0
          %s276 = sshll.u32 %s1, 4
          %s277 = int_to_ptr.hbm [resolvable:$true] %s276
          %s278 = sshll.u32 [#allocation6], 4
          %s279 = int_to_ptr.vmem [resolvable:$true] %s278
          %284 = dma.hbm_to_vmem [thread:$0]  %s277, 2048, %s279, [#allocation7], 64, 64, 4
        $region16: #{tpu_custom_call.1} parent=11 // pred_fallthru
          _
        // Predicated region
        $region17: #{tpu_custom_call.1} parent=11 // pred_check
          %p285 = pneg %p104
        $region18: #{tpu_custom_call.1} parent=11 // pred_check_branch
          %287 = sbr.rel (%p285) target = $region20
        $region19: #{tpu_custom_call.1} parent=11 // pred_region
          _
        $region20: #{tpu_custom_call.1} parent=11 // pred_fallthru
          _
        // Predicated region
        $region21: #{tpu_custom_call.1} parent=11 // pred_check
          %p288 = pneg %p125
        $region22: #{tpu_custom_call.1} parent=11 // pred_check_branch
          %290 = sbr.rel (%p288) target = $region24
        $region23: #{tpu_custom_call.1} parent=11 // pred_region
          %292 = vsyncadd [#allocation7], 0
          %s293 = sshll.u32 %s3, 4
          %s294 = int_to_ptr.hbm [resolvable:$true] %s293
          %s295 = sshll.u32 [#allocation8], 4
          %s296 = int_to_ptr.vmem [resolvable:$true] %s295
          %301 = dma.hbm_to_vmem [thread:$0]  %s294, 1024, %s296, [#allocation7], 64, 64, 4
        $region24: #{tpu_custom_call.1} parent=11 // pred_fallthru
          _
        // Predicated region
        $region25: #{tpu_custom_call.1} parent=11 // pred_check
          %p302 = pneg %p146
        $region26: #{tpu_custom_call.1} parent=11 // pred_check_branch
          %304 = sbr.rel (%p302) target = $region28
        $region27: #{tpu_custom_call.1} parent=11 // pred_region
          _
        $region28: #{tpu_custom_call.1} parent=11 // pred_fallthru
          _
        // Predicated region
        $region29: #{tpu_custom_call.1} parent=11 // pred_check
          %p305 = pneg %p167
        $region30: #{tpu_custom_call.1} parent=11 // pred_check_branch
          %307 = sbr.rel (%p305) target = $region32
        $region31: #{tpu_custom_call.1} parent=11 // pred_region
          %309 = vsyncadd [#allocation10], 0
          %s310 = sshll.u32 %s5, 4
          %s311 = int_to_ptr.hbm [resolvable:$true] %s310
          %s312 = sshll.u32 [#allocation9], 4
          %s313 = int_to_ptr.vmem [resolvable:$true] %s312
          %318 = dma.hbm_to_vmem [thread:$0]  %s311, 1024, %s313, [#allocation10], 64, 64, 4
        $region32: #{tpu_custom_call.1} parent=11 // pred_fallthru
          _
        // Predicated region
        $region33: #{tpu_custom_call.1} parent=11 // pred_check
          %p319 = pneg %p188
        $region34: #{tpu_custom_call.1} parent=11 // pred_check_branch
          %321 = sbr.rel (%p319) target = $region36
        $region35: #{tpu_custom_call.1} parent=11 // pred_region
          _
        $region36: #{tpu_custom_call.1} parent=11 // pred_fallthru
          _
        // Predicated region
        $region37: #{tpu_custom_call.1} parent=11 // pred_check
          %p322 = pneg %p209
        $region38: #{tpu_custom_call.1} parent=11 // pred_check_branch
          %324 = sbr.rel (%p322) target = $region40
        $region39: #{tpu_custom_call.1} parent=11 // pred_region
          _
        $region40: #{tpu_custom_call.1} parent=11 // pred_fallthru
          _
        // Predicated region
        $region41: #{tpu_custom_call.1} parent=11 // pred_check
          %p325 = pneg %p230
        $region42: #{tpu_custom_call.1} parent=11 // pred_check_branch
          %327 = sbr.rel (%p325) target = $region44
        $region43: #{tpu_custom_call.1} parent=11 // pred_region
          _
        $region44: #{tpu_custom_call.1} parent=11 // pred_fallthru
          _
      $region12: #{tpu_custom_call.1} parent=5 // pred_fallthru
        _
      %p328 = scmp.lt.s32.totalorder %s22, 2
      // Predicated region
      $region45: #{tpu_custom_call.1} parent=5 // pred_check
        %p329 = pneg %p328
      $region46: #{tpu_custom_call.1} parent=5 // pred_check_branch
        %331 = sbr.rel (%p329) target = $region48
      $region47: #{tpu_custom_call.1} parent=5 // pred_region
        // Predicated region
        $region49: #{tpu_custom_call.1} parent=47 // pred_check
          %p332 = pneg %p56
        $region50: #{tpu_custom_call.1} parent=47 // pred_check_branch
          %334 = sbr.rel (%p332) target = $region52
        $region51: #{tpu_custom_call.1} parent=47 // pred_region
          %s335 = sand.u32 %s46, 1
          %s336 = scalar_lea.sflag [#allocation5], %s335
          %s337 = sand.u32 %s46, 1
          %s338 = smul.addr %s337, 1024
          %s339 = scalar_lea.vmem [#allocation4], %s338
          %s340 = smul.u32 8, %s29
          %s341 = smul.u32 8, %s30
          %343 = vsyncadd %s336, 0
          %s344 = smul.addr %s341, 2
          %s345 = smul.addr %s340, 16
          %s346 = sadd.s32 %s344, %s345
          %s347 = smul.addr %s346, 8
          %s348 = scalar_lea.hbm %s0, %s347
          %s349 = sshll.u32 %s348, 4
          %s350 = int_to_ptr.hbm [resolvable:$true] %s349
          %s351 = sshll.u32 %s339, 4
          %s352 = int_to_ptr.vmem [resolvable:$true] %s351
          %357 = dma.hbm_to_vmem [thread:$0]  %s350, 16384, %s352, %s336, 256, 256, 16
        $region52: #{tpu_custom_call.1} parent=47 // pred_fallthru
          _
      $region48: #{tpu_custom_call.1} parent=5 // pred_fallthru
        _
      %p358 = scmp.le.s32.totalorder 1, %s22
      %p359 = scmp.lt.s32.totalorder %s22, 3
      %p360 = pnand %p358, %p359
      %p361 = pneg %p360
      // Predicated region
      $region53: #{tpu_custom_call.1} parent=5 // pred_check
        _
      $region54: #{tpu_custom_call.1} parent=5 // pred_check_branch
        %363 = sbr.rel (%p360) target = $region56
      $region55: #{tpu_custom_call.1} parent=5 // pred_region
        %s364 = ssub.s32 %s22, 1
        %s365 = sand.u32 %s49, 1
        %s366 = scalar_lea.sflag [#allocation5], %s365
        %s367 = sand.u32 %s49, 1
        %s368 = smul.addr %s367, 1024
        %s369 = scalar_lea.vmem [#allocation4], %s368
        // Predicated region
        $region57: #{tpu_custom_call.1} parent=55 // pred_check
          %p370 = pneg %p62
        $region58: #{tpu_custom_call.1} parent=55 // pred_check_branch
          %372 = sbr.rel (%p370) target = $region60
        $region59: #{tpu_custom_call.1} parent=55 // pred_region
          %374 = dma.done %s366, 16384
        $region60: #{tpu_custom_call.1} parent=55 // pred_fallthru
          _
        // Predicated region
        $region61: #{tpu_custom_call.1} parent=55 // pred_check
          %p375 = pneg %p83
        $region62: #{tpu_custom_call.1} parent=55 // pred_check_branch
          %377 = sbr.rel (%p375) target = $region64
        $region63: #{tpu_custom_call.1} parent=55 // pred_region
          %379 = dma.done [#allocation7], 2048
        $region64: #{tpu_custom_call.1} parent=55 // pred_fallthru
          _
        // Predicated region
        $region65: #{tpu_custom_call.1} parent=55 // pred_check
          %p380 = pneg %p125
        $region66: #{tpu_custom_call.1} parent=55 // pred_check_branch
          %382 = sbr.rel (%p380) target = $region68
        $region67: #{tpu_custom_call.1} parent=55 // pred_region
          %384 = dma.done [#allocation7], 1024
        $region68: #{tpu_custom_call.1} parent=55 // pred_fallthru
          _
        // Predicated region
        $region69: #{tpu_custom_call.1} parent=55 // pred_check
          %p385 = pneg %p167
        $region70: #{tpu_custom_call.1} parent=55 // pred_check_branch
          %387 = sbr.rel (%p385) target = $region72
        $region71: #{tpu_custom_call.1} parent=55 // pred_region
          %389 = dma.done [#allocation10], 1024
        $region72: #{tpu_custom_call.1} parent=55 // pred_fallthru
          _
        %s390 = sand.u32 %s49, 1
        %s391 = scalar_lea.sflag [#allocation5], %s390
        %s392 = sand.u32 %s49, 1
        %s393 = smul.addr %s392, 1024
        %s394 = scalar_lea.vmem [#allocation4], %s393
        %p395 = pneg %p62
        %p396 = pneg %p59
        %p397 = pneg %p83
        %p398 = pneg %p80
        %p399 = pneg %p104
        %p400 = pneg %p101
        %p401 = pneg %p125
        %p402 = pneg %p122
        %p403 = pneg %p146
        %p404 = pneg %p143
        %p405 = pneg %p167
        %p406 = pneg %p164
        %p407 = pneg %p188
        %p408 = pneg %p185
        %p409 = pneg %p209
        %p410 = pneg %p206
        %p411 = pneg %p230
        %p412 = pneg %p227
        %p413 = pneg %p256
        %p414 = pneg %p253
        %p415 = scmp.lt.s32.totalorder %s31, 1
        %s416 = scalar_select %p415, %s31, 1
        %s417 = smul.addr %s416, 8
        %s418 = scalar_lea.vmem %s9, %s417
        %s419 = smul.u32 8, %s31
        %s420 = smul.u32 8, %s32
        %p421 = scmp.lt.s32.totalorder %s31, 1
        %s422 = scalar_select %p421, %s31, 1
        %s423 = smul.addr %s422, 8
        %s424 = scalar_lea.vmem %s9, %s423
        %p425 = scmp.eq.s32.totalorder %s32, 0
        // Predicated region
        $region73: #{tpu_custom_call.1} parent=55 // pred_check
          %p426 = pneg %p425
        $region74: #{tpu_custom_call.1} parent=55 // pred_check_branch
          %428 = sbr.rel (%p426) target = $region76
        $region75: #{tpu_custom_call.1} parent=55 // pred_region
          %429 = vst [vmem:[#allocation2] sm:$0xff] 0.0
          %430 = vst [vmem:[#allocation2 + $0x8] sm:$0xff] 0.0
          %431 = vst [vmem:[#allocation2 + $0x10] sm:$0xff] 0.0
          %432 = vst [vmem:[#allocation2 + $0x18] sm:$0xff] 0.0
          %433 = vst [vmem:[#allocation2 + $0x20] sm:$0xff] 0.0
          %434 = vst [vmem:[#allocation2 + $0x28] sm:$0xff] 0.0
          %435 = vst [vmem:[#allocation2 + $0x30] sm:$0xff] 0.0
          %436 = vst [vmem:[#allocation2 + $0x38] sm:$0xff] 0.0
          %437 = vst [vmem:[#allocation2 + $0x40] sm:$0xff] 0.0
          %438 = vst [vmem:[#allocation2 + $0x48] sm:$0xff] 0.0
          %439 = vst [vmem:[#allocation2 + $0x50] sm:$0xff] 0.0
          %440 = vst [vmem:[#allocation2 + $0x58] sm:$0xff] 0.0
          %441 = vst [vmem:[#allocation2 + $0x60] sm:$0xff] 0.0
          %442 = vst [vmem:[#allocation2 + $0x68] sm:$0xff] 0.0
          %443 = vst [vmem:[#allocation2 + $0x70] sm:$0xff] 0.0
          %444 = vst [vmem:[#allocation2 + $0x78] sm:$0xff] 0.0
        $region76: #{tpu_custom_call.1} parent=55 // pred_fallthru
          _
        %v445 = vld [vmem:[#allocation2] sm:$0xff]
        %v446 = vld [vmem:[#allocation2 + $0x8] sm:$0xff]
        %v447 = vld [vmem:[#allocation2 + $0x10] sm:$0xff]
        %v448 = vld [vmem:[#allocation2 + $0x18] sm:$0xff]
        %v449 = vld [vmem:[#allocation2 + $0x20] sm:$0xff]
        %v450 = vld [vmem:[#allocation2 + $0x28] sm:$0xff]
        %v451 = vld [vmem:[#allocation2 + $0x30] sm:$0xff]
        %v452 = vld [vmem:[#allocation2 + $0x38] sm:$0xff]
        %v453 = vld [vmem:[#allocation2 + $0x40] sm:$0xff]
        %v454 = vld [vmem:[#allocation2 + $0x48] sm:$0xff]
        %v455 = vld [vmem:[#allocation2 + $0x50] sm:$0xff]
        %v456 = vld [vmem:[#allocation2 + $0x58] sm:$0xff]
        %v457 = vld [vmem:[#allocation2 + $0x60] sm:$0xff]
        %v458 = vld [vmem:[#allocation2 + $0x68] sm:$0xff]
        %v459 = vld [vmem:[#allocation2 + $0x70] sm:$0xff]
        %v460 = vld [vmem:[#allocation2 + $0x78] sm:$0xff]
        %v461 = vld [vmem:[%s369] sm:$0xff]
        %v462 = vld [vmem:[%s369 + $0x8] sm:$0xff]
        %v463 = vld [vmem:[%s369 + $0x10] sm:$0xff]
        %v464 = vld [vmem:[%s369 + $0x18] sm:$0xff]
        %v465 = vld [vmem:[%s369 + $0x20] sm:$0xff]
        %v466 = vld [vmem:[%s369 + $0x28] sm:$0xff]
        %v467 = vld [vmem:[%s369 + $0x30] sm:$0xff]
        %v468 = vld [vmem:[%s369 + $0x38] sm:$0xff]
        %v469 = vld [vmem:[%s369 + $0x40] sm:$0xff]
        %v470 = vld [vmem:[%s369 + $0x48] sm:$0xff]
        %v471 = vld [vmem:[%s369 + $0x50] sm:$0xff]
        %v472 = vld [vmem:[%s369 + $0x58] sm:$0xff]
        %v473 = vld [vmem:[%s369 + $0x60] sm:$0xff]
        %v474 = vld [vmem:[%s369 + $0x68] sm:$0xff]
        %v475 = vld [vmem:[%s369 + $0x70] sm:$0xff]
        %v476 = vld [vmem:[%s369 + $0x78] sm:$0xff]
        %v477 = vld [vmem:[%s369 + $0x80] sm:$0xff]
        %v478 = vld [vmem:[%s369 + $0x88] sm:$0xff]
        %v479 = vld [vmem:[%s369 + $0x90] sm:$0xff]
        %v480 = vld [vmem:[%s369 + $0x98] sm:$0xff]
        %v481 = vld [vmem:[%s369 + $0xa0] sm:$0xff]
        %v482 = vld [vmem:[%s369 + $0xa8] sm:$0xff]
        %v483 = vld [vmem:[%s369 + $0xb0] sm:$0xff]
        %v484 = vld [vmem:[%s369 + $0xb8] sm:$0xff]
        %v485 = vld [vmem:[%s369 + $0xc0] sm:$0xff]
        %v486 = vld [vmem:[%s369 + $0xc8] sm:$0xff]
        %v487 = vld [vmem:[%s369 + $0xd0] sm:$0xff]
        %v488 = vld [vmem:[%s369 + $0xd8] sm:$0xff]
        %v489 = vld [vmem:[%s369 + $0xe0] sm:$0xff]
        %v490 = vld [vmem:[%s369 + $0xe8] sm:$0xff]
        %v491 = vld [vmem:[%s369 + $0xf0] sm:$0xff]
        %v492 = vld [vmem:[%s369 + $0xf8] sm:$0xff]
        %v493 = vld [vmem:[%s369 + $0x100] sm:$0xff]
        %v494 = vld [vmem:[%s369 + $0x108] sm:$0xff]
        %v495 = vld [vmem:[%s369 + $0x110] sm:$0xff]
        %v496 = vld [vmem:[%s369 + $0x118] sm:$0xff]
        %v497 = vld [vmem:[%s369 + $0x120] sm:$0xff]
        %v498 = vld [vmem:[%s369 + $0x128] sm:$0xff]
        %v499 = vld [vmem:[%s369 + $0x130] sm:$0xff]
        %v500 = vld [vmem:[%s369 + $0x138] sm:$0xff]
        %v501 = vld [vmem:[%s369 + $0x140] sm:$0xff]
        %v502 = vld [vmem:[%s369 + $0x148] sm:$0xff]
        %v503 = vld [vmem:[%s369 + $0x150] sm:$0xff]
        %v504 = vld [vmem:[%s369 + $0x158] sm:$0xff]
        %v505 = vld [vmem:[%s369 + $0x160] sm:$0xff]
        %v506 = vld [vmem:[%s369 + $0x168] sm:$0xff]
        %v507 = vld [vmem:[%s369 + $0x170] sm:$0xff]
        %v508 = vld [vmem:[%s369 + $0x178] sm:$0xff]
        %v509 = vld [vmem:[%s369 + $0x180] sm:$0xff]
        %v510 = vld [vmem:[%s369 + $0x188] sm:$0xff]
        %v511 = vld [vmem:[%s369 + $0x190] sm:$0xff]
        %v512 = vld [vmem:[%s369 + $0x198] sm:$0xff]
        %v513 = vld [vmem:[%s369 + $0x1a0] sm:$0xff]
        %v514 = vld [vmem:[%s369 + $0x1a8] sm:$0xff]
        %v515 = vld [vmem:[%s369 + $0x1b0] sm:$0xff]
        %v516 = vld [vmem:[%s369 + $0x1b8] sm:$0xff]
        %v517 = vld [vmem:[%s369 + $0x1c0] sm:$0xff]
        %v518 = vld [vmem:[%s369 + $0x1c8] sm:$0xff]
        %v519 = vld [vmem:[%s369 + $0x1d0] sm:$0xff]
        %v520 = vld [vmem:[%s369 + $0x1d8] sm:$0xff]
        %v521 = vld [vmem:[%s369 + $0x1e0] sm:$0xff]
        %v522 = vld [vmem:[%s369 + $0x1e8] sm:$0xff]
        %v523 = vld [vmem:[%s369 + $0x1f0] sm:$0xff]
        %v524 = vld [vmem:[%s369 + $0x1f8] sm:$0xff]
        %v525 = vld [vmem:[%s369 + $0x200] sm:$0xff]
        %v526 = vld [vmem:[%s369 + $0x208] sm:$0xff]
        %v527 = vld [vmem:[%s369 + $0x210] sm:$0xff]
        %v528 = vld [vmem:[%s369 + $0x218] sm:$0xff]
        %v529 = vld [vmem:[%s369 + $0x220] sm:$0xff]
        %v530 = vld [vmem:[%s369 + $0x228] sm:$0xff]
        %v531 = vld [vmem:[%s369 + $0x230] sm:$0xff]
        %v532 = vld [vmem:[%s369 + $0x238] sm:$0xff]
        %v533 = vld [vmem:[%s369 + $0x240] sm:$0xff]
        %v534 = vld [vmem:[%s369 + $0x248] sm:$0xff]
        %v535 = vld [vmem:[%s369 + $0x250] sm:$0xff]
        %v536 = vld [vmem:[%s369 + $0x258] sm:$0xff]
        %v537 = vld [vmem:[%s369 + $0x260] sm:$0xff]
        %v538 = vld [vmem:[%s369 + $0x268] sm:$0xff]
        %v539 = vld [vmem:[%s369 + $0x270] sm:$0xff]
        %v540 = vld [vmem:[%s369 + $0x278] sm:$0xff]
        %v541 = vld [vmem:[%s369 + $0x280] sm:$0xff]
        %v542 = vld [vmem:[%s369 + $0x288] sm:$0xff]
        %v543 = vld [vmem:[%s369 + $0x290] sm:$0xff]
        %v544 = vld [vmem:[%s369 + $0x298] sm:$0xff]
        %v545 = vld [vmem:[%s369 + $0x2a0] sm:$0xff]
        %v546 = vld [vmem:[%s369 + $0x2a8] sm:$0xff]
        %v547 = vld [vmem:[%s369 + $0x2b0] sm:$0xff]
        %v548 = vld [vmem:[%s369 + $0x2b8] sm:$0xff]
        %v549 = vld [vmem:[%s369 + $0x2c0] sm:$0xff]
        %v550 = vld [vmem:[%s369 + $0x2c8] sm:$0xff]
        %v551 = vld [vmem:[%s369 + $0x2d0] sm:$0xff]
        %v552 = vld [vmem:[%s369 + $0x2d8] sm:$0xff]
        %v553 = vld [vmem:[%s369 + $0x2e0] sm:$0xff]
        %v554 = vld [vmem:[%s369 + $0x2e8] sm:$0xff]
        %v555 = vld [vmem:[%s369 + $0x2f0] sm:$0xff]
        %v556 = vld [vmem:[%s369 + $0x2f8] sm:$0xff]
        %v557 = vld [vmem:[%s369 + $0x300] sm:$0xff]
        %v558 = vld [vmem:[%s369 + $0x308] sm:$0xff]
        %v559 = vld [vmem:[%s369 + $0x310] sm:$0xff]
        %v560 = vld [vmem:[%s369 + $0x318] sm:$0xff]
        %v561 = vld [vmem:[%s369 + $0x320] sm:$0xff]
        %v562 = vld [vmem:[%s369 + $0x328] sm:$0xff]
        %v563 = vld [vmem:[%s369 + $0x330] sm:$0xff]
        %v564 = vld [vmem:[%s369 + $0x338] sm:$0xff]
        %v565 = vld [vmem:[%s369 + $0x340] sm:$0xff]
        %v566 = vld [vmem:[%s369 + $0x348] sm:$0xff]
        %v567 = vld [vmem:[%s369 + $0x350] sm:$0xff]
        %v568 = vld [vmem:[%s369 + $0x358] sm:$0xff]
        %v569 = vld [vmem:[%s369 + $0x360] sm:$0xff]
        %v570 = vld [vmem:[%s369 + $0x368] sm:$0xff]
        %v571 = vld [vmem:[%s369 + $0x370] sm:$0xff]
        %v572 = vld [vmem:[%s369 + $0x378] sm:$0xff]
        %v573 = vld [vmem:[%s369 + $0x380] sm:$0xff]
        %v574 = vld [vmem:[%s369 + $0x388] sm:$0xff]
        %v575 = vld [vmem:[%s369 + $0x390] sm:$0xff]
        %v576 = vld [vmem:[%s369 + $0x398] sm:$0xff]
        %v577 = vld [vmem:[%s369 + $0x3a0] sm:$0xff]
        %v578 = vld [vmem:[%s369 + $0x3a8] sm:$0xff]
        %v579 = vld [vmem:[%s369 + $0x3b0] sm:$0xff]
        %v580 = vld [vmem:[%s369 + $0x3b8] sm:$0xff]
        %v581 = vld [vmem:[%s369 + $0x3c0] sm:$0xff]
        %v582 = vld [vmem:[%s369 + $0x3c8] sm:$0xff]
        %v583 = vld [vmem:[%s369 + $0x3d0] sm:$0xff]
        %v584 = vld [vmem:[%s369 + $0x3d8] sm:$0xff]
        %v585 = vld [vmem:[%s369 + $0x3e0] sm:$0xff]
        %v586 = vld [vmem:[%s369 + $0x3e8] sm:$0xff]
        %v587 = vld [vmem:[%s369 + $0x3f0] sm:$0xff]
        %v588 = vld [vmem:[%s369 + $0x3f8] sm:$0xff]
        %v589 = vadd.f32 %v461, %v463
        %v590 = vadd.f32 %v589, %v465
        %v591 = vadd.f32 %v590, %v467
        %v592 = vadd.f32 %v591, %v469
        %v593 = vadd.f32 %v592, %v471
        %v594 = vadd.f32 %v593, %v473
        %v595 = vadd.f32 %v594, %v475
        %v596 = vadd.f32 %v462, %v464
        %v597 = vadd.f32 %v596, %v466
        %v598 = vadd.f32 %v597, %v468
        %v599 = vadd.f32 %v598, %v470
        %v600 = vadd.f32 %v599, %v472
        %v601 = vadd.f32 %v600, %v474
        %v602 = vadd.f32 %v601, %v476
        %v603 = vadd.f32 %v477, %v479
        %v604 = vadd.f32 %v603, %v481
        %v605 = vadd.f32 %v604, %v483
        %v606 = vadd.f32 %v605, %v485
        %v607 = vadd.f32 %v606, %v487
        %v608 = vadd.f32 %v607, %v489
        %v609 = vadd.f32 %v608, %v491
        %v610 = vadd.f32 %v478, %v480
        %v611 = vadd.f32 %v610, %v482
        %v612 = vadd.f32 %v611, %v484
        %v613 = vadd.f32 %v612, %v486
        %v614 = vadd.f32 %v613, %v488
        %v615 = vadd.f32 %v614, %v490
        %v616 = vadd.f32 %v615, %v492
        %v617 = vadd.f32 %v493, %v495
        %v618 = vadd.f32 %v617, %v497
        %v619 = vadd.f32 %v618, %v499
        %v620 = vadd.f32 %v619, %v501
        %v621 = vadd.f32 %v620, %v503
        %v622 = vadd.f32 %v621, %v505
        %v623 = vadd.f32 %v622, %v507
        %v624 = vadd.f32 %v494, %v496
        %v625 = vadd.f32 %v624, %v498
        %v626 = vadd.f32 %v625, %v500
        %v627 = vadd.f32 %v626, %v502
        %v628 = vadd.f32 %v627, %v504
        %v629 = vadd.f32 %v628, %v506
        %v630 = vadd.f32 %v629, %v508
        %v631 = vadd.f32 %v509, %v511
        %v632 = vadd.f32 %v631, %v513
        %v633 = vadd.f32 %v632, %v515
        %v634 = vadd.f32 %v633, %v517
        %v635 = vadd.f32 %v634, %v519
        %v636 = vadd.f32 %v635, %v521
        %v637 = vadd.f32 %v636, %v523
        %v638 = vadd.f32 %v510, %v512
        %v639 = vadd.f32 %v638, %v514
        %v640 = vadd.f32 %v639, %v516
        %v641 = vadd.f32 %v640, %v518
        %v642 = vadd.f32 %v641, %v520
        %v643 = vadd.f32 %v642, %v522
        %v644 = vadd.f32 %v643, %v524
        %v645 = vadd.f32 %v525, %v527
        %v646 = vadd.f32 %v645, %v529
        %v647 = vadd.f32 %v646, %v531
        %v648 = vadd.f32 %v647, %v533
        %v649 = vadd.f32 %v648, %v535
        %v650 = vadd.f32 %v649, %v537
        %v651 = vadd.f32 %v650, %v539
        %v652 = vadd.f32 %v526, %v528
        %v653 = vadd.f32 %v652, %v530
        %v654 = vadd.f32 %v653, %v532
        %v655 = vadd.f32 %v654, %v534
        %v656 = vadd.f32 %v655, %v536
        %v657 = vadd.f32 %v656, %v538
        %v658 = vadd.f32 %v657, %v540
        %v659 = vadd.f32 %v541, %v543
        %v660 = vadd.f32 %v659, %v545
        %v661 = vadd.f32 %v660, %v547
        %v662 = vadd.f32 %v661, %v549
        %v663 = vadd.f32 %v662, %v551
        %v664 = vadd.f32 %v663, %v553
        %v665 = vadd.f32 %v664, %v555
        %v666 = vadd.f32 %v542, %v544
        %v667 = vadd.f32 %v666, %v546
        %v668 = vadd.f32 %v667, %v548
        %v669 = vadd.f32 %v668, %v550
        %v670 = vadd.f32 %v669, %v552
        %v671 = vadd.f32 %v670, %v554
        %v672 = vadd.f32 %v671, %v556
        %v673 = vadd.f32 %v557, %v559
        %v674 = vadd.f32 %v673, %v561
        %v675 = vadd.f32 %v674, %v563
        %v676 = vadd.f32 %v675, %v565
        %v677 = vadd.f32 %v676, %v567
        %v678 = vadd.f32 %v677, %v569
        %v679 = vadd.f32 %v678, %v571
        %v680 = vadd.f32 %v558, %v560
        %v681 = vadd.f32 %v680, %v562
        %v682 = vadd.f32 %v681, %v564
        %v683 = vadd.f32 %v682, %v566
        %v684 = vadd.f32 %v683, %v568
        %v685 = vadd.f32 %v684, %v570
        %v686 = vadd.f32 %v685, %v572
        %v687 = vadd.f32 %v573, %v575
        %v688 = vadd.f32 %v687, %v577
        %v689 = vadd.f32 %v688, %v579
        %v690 = vadd.f32 %v689, %v581
        %v691 = vadd.f32 %v690, %v583
        %v692 = vadd.f32 %v691, %v585
        %v693 = vadd.f32 %v692, %v587
        %v694 = vadd.f32 %v574, %v576
        %v695 = vadd.f32 %v694, %v578
        %v696 = vadd.f32 %v695, %v580
        %v697 = vadd.f32 %v696, %v582
        %v698 = vadd.f32 %v697, %v584
        %v699 = vadd.f32 %v698, %v586
        %v700 = vadd.f32 %v699, %v588
        %v701 = vadd.f32 %v445, %v595
        %v702 = vadd.f32 %v446, %v602
        %v703 = vadd.f32 %v447, %v609
        %v704 = vadd.f32 %v448, %v616
        %v705 = vadd.f32 %v449, %v623
        %v706 = vadd.f32 %v450, %v630
        %v707 = vadd.f32 %v451, %v637
        %v708 = vadd.f32 %v452, %v644
        %v709 = vadd.f32 %v453, %v651
        %v710 = vadd.f32 %v454, %v658
        %v711 = vadd.f32 %v455, %v665
        %v712 = vadd.f32 %v456, %v672
        %v713 = vadd.f32 %v457, %v679
        %v714 = vadd.f32 %v458, %v686
        %v715 = vadd.f32 %v459, %v693
        %v716 = vadd.f32 %v460, %v700
        %717 = vst [vmem:[#allocation2] sm:$0xff] %v701
        %718 = vst [vmem:[#allocation2 + $0x8] sm:$0xff] %v702
        %719 = vst [vmem:[#allocation2 + $0x10] sm:$0xff] %v703
        %720 = vst [vmem:[#allocation2 + $0x18] sm:$0xff] %v704
        %721 = vst [vmem:[#allocation2 + $0x20] sm:$0xff] %v705
        %722 = vst [vmem:[#allocation2 + $0x28] sm:$0xff] %v706
        %723 = vst [vmem:[#allocation2 + $0x30] sm:$0xff] %v707
        %724 = vst [vmem:[#allocation2 + $0x38] sm:$0xff] %v708
        %725 = vst [vmem:[#allocation2 + $0x40] sm:$0xff] %v709
        %726 = vst [vmem:[#allocation2 + $0x48] sm:$0xff] %v710
        %727 = vst [vmem:[#allocation2 + $0x50] sm:$0xff] %v711
        %728 = vst [vmem:[#allocation2 + $0x58] sm:$0xff] %v712
        %729 = vst [vmem:[#allocation2 + $0x60] sm:$0xff] %v713
        %730 = vst [vmem:[#allocation2 + $0x68] sm:$0xff] %v714
        %731 = vst [vmem:[#allocation2 + $0x70] sm:$0xff] %v715
        %732 = vst [vmem:[#allocation2 + $0x78] sm:$0xff] %v716
        // Predicated region
        $region77: #{tpu_custom_call.1} parent=55 // pred_check
          %p733 = pneg %p425
        $region78: #{tpu_custom_call.1} parent=55 // pred_check_branch
          %735 = sbr.rel (%p733) target = $region80
        $region79: #{tpu_custom_call.1} parent=55 // pred_region
          %v736 = vld [vmem:[#allocation2] sm:$0xff]
          %v737 = vld [vmem:[#allocation2 + $0x8] sm:$0xff]
          %v738 = vld [vmem:[#allocation2 + $0x10] sm:$0xff]
          %v739 = vld [vmem:[#allocation2 + $0x18] sm:$0xff]
          %v740 = vld [vmem:[#allocation2 + $0x20] sm:$0xff]
          %v741 = vld [vmem:[#allocation2 + $0x28] sm:$0xff]
          %v742 = vld [vmem:[#allocation2 + $0x30] sm:$0xff]
          %v743 = vld [vmem:[#allocation2 + $0x38] sm:$0xff]
          %v744 = vld [vmem:[#allocation2 + $0x40] sm:$0xff]
          %v745 = vld [vmem:[#allocation2 + $0x48] sm:$0xff]
          %v746 = vld [vmem:[#allocation2 + $0x50] sm:$0xff]
          %v747 = vld [vmem:[#allocation2 + $0x58] sm:$0xff]
          %v748 = vld [vmem:[#allocation2 + $0x60] sm:$0xff]
          %v749 = vld [vmem:[#allocation2 + $0x68] sm:$0xff]
          %v750 = vld [vmem:[#allocation2 + $0x70] sm:$0xff]
          %v751 = vld [vmem:[#allocation2 + $0x78] sm:$0xff]
          %v752 = vrot.slane %v736, 4
          %v753 = vadd.f32 %v736, %v752
          %v754 = vrot.slane %v753, 2
          %v755 = vadd.f32 %v753, %v754
          %v756 = vrot.slane %v755, 1
          %v757 = vadd.f32 %v755, %v756
          %v758 = vrot.slane %v737, 4
          %v759 = vadd.f32 %v737, %v758
          %v760 = vrot.slane %v759, 2
          %v761 = vadd.f32 %v759, %v760
          %v762 = vrot.slane %v761, 1
          %v763 = vadd.f32 %v761, %v762
          %v764 = vrot.slane %v738, 4
          %v765 = vadd.f32 %v738, %v764
          %v766 = vrot.slane %v765, 2
          %v767 = vadd.f32 %v765, %v766
          %v768 = vrot.slane %v767, 1
          %v769 = vadd.f32 %v767, %v768
          %v770 = vrot.slane %v739, 4
          %v771 = vadd.f32 %v739, %v770
          %v772 = vrot.slane %v771, 2
          %v773 = vadd.f32 %v771, %v772
          %v774 = vrot.slane %v773, 1
          %v775 = vadd.f32 %v773, %v774
          %v776 = vrot.slane %v740, 4
          %v777 = vadd.f32 %v740, %v776
          %v778 = vrot.slane %v777, 2
          %v779 = vadd.f32 %v777, %v778
          %v780 = vrot.slane %v779, 1
          %v781 = vadd.f32 %v779, %v780
          %v782 = vrot.slane %v741, 4
          %v783 = vadd.f32 %v741, %v782
          %v784 = vrot.slane %v783, 2
          %v785 = vadd.f32 %v783, %v784
          %v786 = vrot.slane %v785, 1
          %v787 = vadd.f32 %v785, %v786
          %v788 = vrot.slane %v742, 4
          %v789 = vadd.f32 %v742, %v788
          %v790 = vrot.slane %v789, 2
          %v791 = vadd.f32 %v789, %v790
          %v792 = vrot.slane %v791, 1
          %v793 = vadd.f32 %v791, %v792
          %v794 = vrot.slane %v743, 4
          %v795 = vadd.f32 %v743, %v794
          %v796 = vrot.slane %v795, 2
          %v797 = vadd.f32 %v795, %v796
          %v798 = vrot.slane %v797, 1
          %v799 = vadd.f32 %v797, %v798
          %v800 = vrot.slane %v744, 4
          %v801 = vadd.f32 %v744, %v800
          %v802 = vrot.slane %v801, 2
          %v803 = vadd.f32 %v801, %v802
          %v804 = vrot.slane %v803, 1
          %v805 = vadd.f32 %v803, %v804
          %v806 = vrot.slane %v745, 4
          %v807 = vadd.f32 %v745, %v806
          %v808 = vrot.slane %v807, 2
          %v809 = vadd.f32 %v807, %v808
          %v810 = vrot.slane %v809, 1
          %v811 = vadd.f32 %v809, %v810
          %v812 = vrot.slane %v746, 4
          %v813 = vadd.f32 %v746, %v812
          %v814 = vrot.slane %v813, 2
          %v815 = vadd.f32 %v813, %v814
          %v816 = vrot.slane %v815, 1
          %v817 = vadd.f32 %v815, %v816
          %v818 = vrot.slane %v747, 4
          %v819 = vadd.f32 %v747, %v818
          %v820 = vrot.slane %v819, 2
          %v821 = vadd.f32 %v819, %v820
          %v822 = vrot.slane %v821, 1
          %v823 = vadd.f32 %v821, %v822
          %v824 = vrot.slane %v748, 4
          %v825 = vadd.f32 %v748, %v824
          %v826 = vrot.slane %v825, 2
          %v827 = vadd.f32 %v825, %v826
          %v828 = vrot.slane %v827, 1
          %v829 = vadd.f32 %v827, %v828
          %v830 = vrot.slane %v749, 4
          %v831 = vadd.f32 %v749, %v830
          %v832 = vrot.slane %v831, 2
          %v833 = vadd.f32 %v831, %v832
          %v834 = vrot.slane %v833, 1
          %v835 = vadd.f32 %v833, %v834
          %v836 = vrot.slane %v750, 4
          %v837 = vadd.f32 %v750, %v836
          %v838 = vrot.slane %v837, 2
          %v839 = vadd.f32 %v837, %v838
          %v840 = vrot.slane %v839, 1
          %v841 = vadd.f32 %v839, %v840
          %v842 = vrot.slane %v751, 4
          %v843 = vadd.f32 %v751, %v842
          %v844 = vrot.slane %v843, 2
          %v845 = vadd.f32 %v843, %v844
          %v846 = vrot.slane %v845, 1
          %v847 = vadd.f32 %v845, %v846
          %v848 = vmul.f32 %v757, 0.015625
          %v849 = vmul.f32 %v763, 0.015625
          %v850 = vmul.f32 %v769, 0.015625
          %v851 = vmul.f32 %v775, 0.015625
          %v852 = vmul.f32 %v781, 0.015625
          %v853 = vmul.f32 %v787, 0.015625
          %v854 = vmul.f32 %v793, 0.015625
          %v855 = vmul.f32 %v799, 0.015625
          %v856 = vmul.f32 %v805, 0.015625
          %v857 = vmul.f32 %v811, 0.015625
          %v858 = vmul.f32 %v817, 0.015625
          %v859 = vmul.f32 %v823, 0.015625
          %v860 = vmul.f32 %v829, 0.015625
          %v861 = vmul.f32 %v835, 0.015625
          %v862 = vmul.f32 %v841, 0.015625
          %v863 = vmul.f32 %v847, 0.015625
          %v864 = vpack.c.bf16 %v848, %v848
          %v865 = vpack.c.bf16 %v849, %v849
          %v866 = vpack.c.bf16 %v850, %v850
          %v867 = vpack.c.bf16 %v851, %v851
          %v868 = vpack.c.bf16 %v852, %v852
          %v869 = vpack.c.bf16 %v853, %v853
          %v870 = vpack.c.bf16 %v854, %v854
          %v871 = vpack.c.bf16 %v855, %v855
          %v872 = vpack.c.bf16 %v856, %v856
          %v873 = vpack.c.bf16 %v857, %v857
          %v874 = vpack.c.bf16 %v858, %v858
          %v875 = vpack.c.bf16 %v859, %v859
          %v876 = vpack.c.bf16 %v860, %v860
          %v877 = vpack.c.bf16 %v861, %v861
          %v878 = vpack.c.bf16 %v862, %v862
          %v879 = vpack.c.bf16 %v863, %v863
          %v880 = vld [vmem:[#allocation6] sm:$0xf]
          %v881 = vld [vmem:[#allocation6 + $0x4] sm:$0xf]
          %v882 = vld [vmem:[#allocation6 + $0x8] sm:$0xf]
          %v883 = vld [vmem:[#allocation6 + $0xc] sm:$0xf]
          %v884 = vld [vmem:[#allocation6 + $0x10] sm:$0xf]
          %v885 = vld [vmem:[#allocation6 + $0x14] sm:$0xf]
          %v886 = vld [vmem:[#allocation6 + $0x18] sm:$0xf]
          %v887 = vld [vmem:[#allocation6 + $0x1c] sm:$0xf]
          %v888 = vld [vmem:[#allocation6 + $0x20] sm:$0xf]
          %v889 = vld [vmem:[#allocation6 + $0x24] sm:$0xf]
          %v890 = vld [vmem:[#allocation6 + $0x28] sm:$0xf]
          %v891 = vld [vmem:[#allocation6 + $0x2c] sm:$0xf]
          %v892 = vld [vmem:[#allocation6 + $0x30] sm:$0xf]
          %v893 = vld [vmem:[#allocation6 + $0x34] sm:$0xf]
          %v894 = vld [vmem:[#allocation6 + $0x38] sm:$0xf]
          %v895 = vld [vmem:[#allocation6 + $0x3c] sm:$0xf]
          %v896 = vld [vmem:[#allocation6 + $0x40] sm:$0xf]
          %v897 = vld [vmem:[#allocation6 + $0x44] sm:$0xf]
          %v898 = vld [vmem:[#allocation6 + $0x48] sm:$0xf]
          %v899 = vld [vmem:[#allocation6 + $0x4c] sm:$0xf]
          %v900 = vld [vmem:[#allocation6 + $0x50] sm:$0xf]
          %v901 = vld [vmem:[#allocation6 + $0x54] sm:$0xf]
          %v902 = vld [vmem:[#allocation6 + $0x58] sm:$0xf]
          %v903 = vld [vmem:[#allocation6 + $0x5c] sm:$0xf]
          %v904 = vld [vmem:[#allocation6 + $0x60] sm:$0xf]
          %v905 = vld [vmem:[#allocation6 + $0x64] sm:$0xf]
          %v906 = vld [vmem:[#allocation6 + $0x68] sm:$0xf]
          %v907 = vld [vmem:[#allocation6 + $0x6c] sm:$0xf]
          %v908 = vld [vmem:[#allocation6 + $0x70] sm:$0xf]
          %v909 = vld [vmem:[#allocation6 + $0x74] sm:$0xf]
          %v910 = vld [vmem:[#allocation6 + $0x78] sm:$0xf]
          %v911 = vld [vmem:[#allocation6 + $0x7c] sm:$0xf]
          %v912 = vld [vmem:[%s2] sm:$0x1]
          %v914 = vperm.slane %v912, 0
          %v932 = vunpack.c.l.b16 %v864
          %v933 = vunpack.c.l.b16 %v865
          %v934 = vunpack.c.l.b16 %v866
          %v935 = vunpack.c.l.b16 %v867
          %v936 = vunpack.c.l.b16 %v868
          %v937 = vunpack.c.l.b16 %v869
          %v938 = vunpack.c.l.b16 %v870
          %v939 = vunpack.c.l.b16 %v871
          %v940 = vunpack.c.l.b16 %v872
          %v941 = vunpack.c.l.b16 %v873
          %v942 = vunpack.c.l.b16 %v874
          %v943 = vunpack.c.l.b16 %v875
          %v944 = vunpack.c.l.b16 %v876
          %v945 = vunpack.c.l.b16 %v877
          %v946 = vunpack.c.l.b16 %v878
          %v947 = vunpack.c.l.b16 %v879
          %vm948 = vcmask 1041409
          %v949 = vsel %vm948, %v934, %v932
          %vm950 = vcmask 1042434
          %v951 = vsel %vm950, %v936, %v949
          %vm952 = vcmask 1043459
          %v953 = vsel %vm952, %v938, %v951
          %vm954 = vcmask 1044484
          %v955 = vsel %vm954, %v940, %v953
          %vm956 = vcmask 1045509
          %v957 = vsel %vm956, %v942, %v955
          %vm958 = vcmask 1046534
          %v959 = vsel %vm958, %v944, %v957
          %vm960 = vcmask 1047559
          %v961 = vsel %vm960, %v946, %v959
          %v962 = vsel %vm948, %v935, %v933
          %v963 = vsel %vm950, %v937, %v962
          %v964 = vsel %vm952, %v939, %v963
          %v965 = vsel %vm954, %v941, %v964
          %v966 = vsel %vm956, %v943, %v965
          %v967 = vsel %vm958, %v945, %v966
          %v968 = vsel %vm960, %v947, %v967
          %v969 = vpack.c.b16 %v961, %v961
          %v970 = vpack.c.b16 %v968, %v968
          %v1005 = vunpack.c.l.b16 %v880
          %v1006 = vunpack.c.l.b16 %v881
          %v1007 = vunpack.c.l.b16 %v882
          %v1008 = vunpack.c.l.b16 %v883
          %v1009 = vunpack.c.l.b16 %v884
          %v1010 = vunpack.c.l.b16 %v885
          %v1011 = vunpack.c.l.b16 %v886
          %v1012 = vunpack.c.l.b16 %v887
          %v1013 = vunpack.c.l.b16 %v888
          %v1014 = vunpack.c.l.b16 %v889
          %v1015 = vunpack.c.l.b16 %v890
          %v1016 = vunpack.c.l.b16 %v891
          %v1017 = vunpack.c.l.b16 %v892
          %v1018 = vunpack.c.l.b16 %v893
          %v1019 = vunpack.c.l.b16 %v894
          %v1020 = vunpack.c.l.b16 %v895
          %v1021 = vunpack.c.l.b16 %v896
          %v1022 = vunpack.c.l.b16 %v897
          %v1023 = vunpack.c.l.b16 %v898
          %v1024 = vunpack.c.l.b16 %v899
          %v1025 = vunpack.c.l.b16 %v900
          %v1026 = vunpack.c.l.b16 %v901
          %v1027 = vunpack.c.l.b16 %v902
          %v1028 = vunpack.c.l.b16 %v903
          %v1029 = vunpack.c.l.b16 %v904
          %v1030 = vunpack.c.l.b16 %v905
          %v1031 = vunpack.c.l.b16 %v906
          %v1032 = vunpack.c.l.b16 %v907
          %v1033 = vunpack.c.l.b16 %v908
          %v1034 = vunpack.c.l.b16 %v909
          %v1035 = vunpack.c.l.b16 %v910
          %v1036 = vunpack.c.l.b16 %v911
          %v1037 = vpack.c.b16 %v1006, %v1005
          %v1038 = vpack.c.b16 %v1008, %v1007
          %v1039 = vpack.c.b16 %v1010, %v1009
          %v1040 = vpack.c.b16 %v1012, %v1011
          %v1041 = vpack.c.b16 %v1014, %v1013
          %v1042 = vpack.c.b16 %v1016, %v1015
          %v1043 = vpack.c.b16 %v1018, %v1017
          %v1044 = vpack.c.b16 %v1020, %v1019
          %v1045 = vpack.c.b16 %v1022, %v1021
          %v1046 = vpack.c.b16 %v1024, %v1023
          %v1047 = vpack.c.b16 %v1026, %v1025
          %v1048 = vpack.c.b16 %v1028, %v1027
          %v1049 = vpack.c.b16 %v1030, %v1029
          %v1050 = vpack.c.b16 %v1032, %v1031
          %v1051 = vpack.c.b16 %v1034, %v1033
          %v1052 = vpack.c.b16 %v1036, %v1035
          %1069 = vmatpush.bf16.msra.mxu0 %v1044
          %1070 = vmatpush.bf16.msra.mxu0 %v1043
          %1071 = vmatpush.bf16.msra.mxu0 %v1042
          %1072 = vmatpush.bf16.msra.mxu0 %v1041
          %1073 = vmatpush.bf16.msra.mxu0 %v1040
          %1074 = vmatpush.bf16.msra.mxu0 %v1039
          %1075 = vmatpush.bf16.msra.mxu0 %v1038
          %1076 = vmatpush.bf16.msra.mxu0 %v1037
          %1077 = vmatmul.bf16.gmra.mxu0 %v969
          %v1078 = vpop.f32.mrf.mxu0
          %v1079 = vadd.f32 %v914, %v1078
          %v1080 = vpop.f32.mrf.mxu0
          %1081 = vdwg.mxu0
          %1082 = vmatpush.bf16.msra.mxu0 %v1052
          %1083 = vmatpush.bf16.msra.mxu0 %v1051
          %1084 = vmatpush.bf16.msra.mxu0 %v1050
          %1085 = vmatpush.bf16.msra.mxu0 %v1049
          %1086 = vmatpush.bf16.msra.mxu0 %v1048
          %1087 = vmatpush.bf16.msra.mxu0 %v1047
          %1088 = vmatpush.bf16.msra.mxu0 %v1046
          %1089 = vmatpush.bf16.msra.mxu0 %v1045
          %1090 = vmatmul.bf16.gmra.mxu0 %v970
          %v1091 = vpop.f32.mrf.mxu0
          %v1092 = vadd.f32 %v1079, %v1091
          %v1093 = vpop.f32.mrf.mxu0
          %1094 = vdwg.mxu0
          %v1095 = vmax.f32 %v1092, 0.0
          %v1096 = vpack.c.bf16 %v1095, %v1095
          %v1097 = vld [vmem:[#allocation8] sm:$0xf]
          %v1098 = vld [vmem:[#allocation8 + $0x4] sm:$0xf]
          %v1099 = vld [vmem:[#allocation8 + $0x8] sm:$0xf]
          %v1100 = vld [vmem:[#allocation8 + $0xc] sm:$0xf]
          %v1101 = vld [vmem:[#allocation8 + $0x10] sm:$0xf]
          %v1102 = vld [vmem:[#allocation8 + $0x14] sm:$0xf]
          %v1103 = vld [vmem:[#allocation8 + $0x18] sm:$0xf]
          %v1104 = vld [vmem:[#allocation8 + $0x1c] sm:$0xf]
          %v1105 = vld [vmem:[#allocation8 + $0x20] sm:$0xf]
          %v1106 = vld [vmem:[#allocation8 + $0x24] sm:$0xf]
          %v1107 = vld [vmem:[#allocation8 + $0x28] sm:$0xf]
          %v1108 = vld [vmem:[#allocation8 + $0x2c] sm:$0xf]
          %v1109 = vld [vmem:[#allocation8 + $0x30] sm:$0xf]
          %v1110 = vld [vmem:[#allocation8 + $0x34] sm:$0xf]
          %v1111 = vld [vmem:[#allocation8 + $0x38] sm:$0xf]
          %v1112 = vld [vmem:[#allocation8 + $0x3c] sm:$0xf]
          %v1113 = vld [vmem:[%s4] sm:$0x1]
          %v1115 = vperm.slane %v1113, 0
          %v1133 = vunpack.c.l.b16 %v1097
          %v1134 = vunpack.c.l.b16 %v1098
          %v1135 = vunpack.c.l.b16 %v1099
          %v1136 = vunpack.c.l.b16 %v1100
          %v1137 = vunpack.c.l.b16 %v1101
          %v1138 = vunpack.c.l.b16 %v1102
          %v1139 = vunpack.c.l.b16 %v1103
          %v1140 = vunpack.c.l.b16 %v1104
          %v1141 = vunpack.c.l.b16 %v1105
          %v1142 = vunpack.c.l.b16 %v1106
          %v1143 = vunpack.c.l.b16 %v1107
          %v1144 = vunpack.c.l.b16 %v1108
          %v1145 = vunpack.c.l.b16 %v1109
          %v1146 = vunpack.c.l.b16 %v1110
          %v1147 = vunpack.c.l.b16 %v1111
          %v1148 = vunpack.c.l.b16 %v1112
          %v1149 = vpack.c.b16 %v1134, %v1133
          %v1150 = vpack.c.b16 %v1136, %v1135
          %v1151 = vpack.c.b16 %v1138, %v1137
          %v1152 = vpack.c.b16 %v1140, %v1139
          %v1153 = vpack.c.b16 %v1142, %v1141
          %v1154 = vpack.c.b16 %v1144, %v1143
          %v1155 = vpack.c.b16 %v1146, %v1145
          %v1156 = vpack.c.b16 %v1148, %v1147
          %1165 = vmatpush.bf16.msra.mxu0 %v1156
          %1166 = vmatpush.bf16.msra.mxu0 %v1155
          %1167 = vmatpush.bf16.msra.mxu0 %v1154
          %1168 = vmatpush.bf16.msra.mxu0 %v1153
          %1169 = vmatpush.bf16.msra.mxu0 %v1152
          %1170 = vmatpush.bf16.msra.mxu0 %v1151
          %1171 = vmatpush.bf16.msra.mxu0 %v1150
          %1172 = vmatpush.bf16.msra.mxu0 %v1149
          %1173 = vmatmul.bf16.gmra.mxu0 %v1096
          %v1174 = vpop.f32.mrf.mxu0
          %v1175 = vadd.f32 %v1115, %v1174
          %v1176 = vpop.f32.mrf.mxu0
          %1177 = vdwg.mxu0
          %v1178 = vmax.f32 %v1175, 0.0
          %v1179 = vpack.c.bf16 %v1178, %v1178
          %v1180 = vld [vmem:[#allocation9] sm:$0xf]
          %v1181 = vld [vmem:[#allocation9 + $0x4] sm:$0xf]
          %v1182 = vld [vmem:[#allocation9 + $0x8] sm:$0xf]
          %v1183 = vld [vmem:[#allocation9 + $0xc] sm:$0xf]
          %v1184 = vld [vmem:[#allocation9 + $0x10] sm:$0xf]
          %v1185 = vld [vmem:[#allocation9 + $0x14] sm:$0xf]
          %v1186 = vld [vmem:[#allocation9 + $0x18] sm:$0xf]
          %v1187 = vld [vmem:[#allocation9 + $0x1c] sm:$0xf]
          %v1188 = vld [vmem:[#allocation9 + $0x20] sm:$0xf]
          %v1189 = vld [vmem:[#allocation9 + $0x24] sm:$0xf]
          %v1190 = vld [vmem:[#allocation9 + $0x28] sm:$0xf]
          %v1191 = vld [vmem:[#allocation9 + $0x2c] sm:$0xf]
          %v1192 = vld [vmem:[#allocation9 + $0x30] sm:$0xf]
          %v1193 = vld [vmem:[#allocation9 + $0x34] sm:$0xf]
          %v1194 = vld [vmem:[#allocation9 + $0x38] sm:$0xf]
          %v1195 = vld [vmem:[#allocation9 + $0x3c] sm:$0xf]
          %v1196 = vld [vmem:[%s6] sm:$0x1]
          %v1198 = vperm.slane %v1196, 0
          %v1216 = vunpack.c.l.b16 %v1180
          %v1217 = vunpack.c.l.b16 %v1181
          %v1218 = vunpack.c.l.b16 %v1182
          %v1219 = vunpack.c.l.b16 %v1183
          %v1220 = vunpack.c.l.b16 %v1184
          %v1221 = vunpack.c.l.b16 %v1185
          %v1222 = vunpack.c.l.b16 %v1186
          %v1223 = vunpack.c.l.b16 %v1187
          %v1224 = vunpack.c.l.b16 %v1188
          %v1225 = vunpack.c.l.b16 %v1189
          %v1226 = vunpack.c.l.b16 %v1190
          %v1227 = vunpack.c.l.b16 %v1191
          %v1228 = vunpack.c.l.b16 %v1192
          %v1229 = vunpack.c.l.b16 %v1193
          %v1230 = vunpack.c.l.b16 %v1194
          %v1231 = vunpack.c.l.b16 %v1195
          %v1232 = vpack.c.b16 %v1217, %v1216
          %v1233 = vpack.c.b16 %v1219, %v1218
          %v1234 = vpack.c.b16 %v1221, %v1220
          %v1235 = vpack.c.b16 %v1223, %v1222
          %v1236 = vpack.c.b16 %v1225, %v1224
          %v1237 = vpack.c.b16 %v1227, %v1226
          %v1238 = vpack.c.b16 %v1229, %v1228
          %v1239 = vpack.c.b16 %v1231, %v1230
          %1248 = vmatpush.bf16.msra.mxu0 %v1239
          %1249 = vmatpush.bf16.msra.mxu0 %v1238
          %1250 = vmatpush.bf16.msra.mxu0 %v1237
          %1251 = vmatpush.bf16.msra.mxu0 %v1236
          %1252 = vmatpush.bf16.msra.mxu0 %v1235
          %1253 = vmatpush.bf16.msra.mxu0 %v1234
          %1254 = vmatpush.bf16.msra.mxu0 %v1233
          %1255 = vmatpush.bf16.msra.mxu0 %v1232
          %1256 = vmatmul.bf16.gmra.mxu0 %v1179
          %v1257 = vpop.f32.mrf.mxu0
          %v1258 = vadd.f32 %v1198, %v1257
          %v1259 = vpop.f32.mrf.mxu0
          %1260 = vdwg.mxu0
          %v1261 = vmax.f32 %v1258, 0.0
          %v1262 = vld [vmem:[%s7] sm:$0x1]
          %v1264 = vperm.slane %v1262, 0
          %v1266 = vmul.f32 %v1261, %v1264
          %1267 = vadd.xlane.f32.xlu0 %v1266
          %v1268 = vpop.xlane.xlu0 %1267
          %v1269 = vld [vmem:[#allocation3] sm:$0x1]
          %v1271 = vperm.slane %v1269, 0
          %v1273 = vadd.f32 %v1268, %v1271
          %vm1274 = vcmask 7168
          %1275 = vst.msk [vmem:[%s424] sm:$0xff] %vm1274, %v1273
        $region80: #{tpu_custom_call.1} parent=55 // pred_fallthru
          _
        %p1276 = scmp.lt.s32.totalorder %s31, 1
        %s1277 = scalar_select %p1276, %s31, 1
        %s1278 = smul.addr %s1277, 8
        %s1279 = scalar_lea.vmem %s9, %s1278
        // Predicated region
        $region81: #{tpu_custom_call.1} parent=55 // pred_check
          %p1280 = pneg %p253
        $region82: #{tpu_custom_call.1} parent=55 // pred_check_branch
          %1282 = sbr.rel (%p1280) target = $region84
        $region83: #{tpu_custom_call.1} parent=55 // pred_region
          _
        $region84: #{tpu_custom_call.1} parent=55 // pred_fallthru
          _
      $region56: #{tpu_custom_call.1} parent=5 // pred_fallthru
        _
      %p1283 = scmp.le.s32.totalorder 2, %s22
      // Predicated region
      $region85: #{tpu_custom_call.1} parent=5 // pred_check
        %p1284 = pneg %p1283
      $region86: #{tpu_custom_call.1} parent=5 // pred_check_branch
        %1286 = sbr.rel (%p1284) target = $region88
      $region87: #{tpu_custom_call.1} parent=5 // pred_region
        %s1287 = ssub.s32 %s22, 2
        // Predicated region
        $region89: #{tpu_custom_call.1} parent=87 // pred_check
          %p1288 = pneg %p259
        $region90: #{tpu_custom_call.1} parent=87 // pred_check_branch
          %1290 = sbr.rel (%p1288) target = $region92
        $region91: #{tpu_custom_call.1} parent=87 // pred_region
          %p1291 = scmp.lt.s32.totalorder %s33, 1
          %s1292 = scalar_select %p1291, %s33, 1
          %s1293 = smul.addr %s1292, 8
          %s1294 = scalar_lea.vmem %s9, %s1293
        $region92: #{tpu_custom_call.1} parent=87 // pred_fallthru
          _
      $region88: #{tpu_custom_call.1} parent=5 // pred_fallthru
        _
    $region6: #{tpu_custom_call.1} parent=1 // loop_footer
      %s26 = sadd.s32 1, %s22
    $region7: #{tpu_custom_call.1} parent=1 // loop_footer_branch
      %21 = sbr.rel target = $region3
    $region8: #{tpu_custom_call.1} parent=1 // loop_exit
      _
    %1295 = vsyncpa [#allocation5], 1
    %s1296 = scalar_lea.sflag [#allocation5], 1
    %1297 = vsyncpa %s1296, 1
    %1298 = vsyncpa [#allocation7], 1
    %1299 = vsyncpa [#allocation10], 1

</llo_original>
